<compile_context>
chip_gen: v6e
topology: v6e:2x2x1
jax: 0.10.0
libtpu: 0.0.40
codegen_flags: <defaults>
</compile_context>

<pallas_src>
import functools

import jax
import jax.numpy as jnp
from jax import lax
from jax.experimental import pallas as pl
from jax.experimental.pallas import tpu as pltpu

LN_EPS = 1e-5


# ----------------------------------------------------------------------------
# Kernel 1: the whole decoder stack.
#   grid = (B, n_layer): batch axis "parallel", layer axis "arbitrary".
#   The (T, E) activation lives in a VMEM scratch and is carried across the
#   layer axis; per-layer weights are selected by the layer grid index.
#   At the last layer the final LayerNorm (ln_f) is applied and written out.
# ----------------------------------------------------------------------------
def _decoder_kernel(num_heads,
                    x_ref,
                    ln1_g, ln1_b, wqkv_ref, wp_ref, bp_ref,
                    ln2_g, ln2_b, w1_ref, b1_ref, w2_ref, b2_ref,
                    lnf_g, lnf_b,
                    out_ref,
                    x_scratch):
    l = pl.program_id(1)
    n_layer = pl.num_programs(1)

    @pl.when(l == 0)
    def _():
        x_scratch[...] = x_ref[0]                  # load residual stream once

    x = x_scratch[...]                             # (T, E) f32
    T, E = x.shape
    H = num_heads
    hs = E // H
    cdt = wqkv_ref.dtype                           # matmul compute dtype (bf16)
    scale = float(E) ** -0.5                       # PyTorch: C ** (-0.5), C=n_embed

    def layernorm(v, g, b):
        mu = jnp.mean(v, axis=-1, keepdims=True)
        var = jnp.mean((v - mu) ** 2, axis=-1, keepdims=True)
        return (v - mu) * lax.rsqrt(var + LN_EPS) * g + b

    # ---------------- self-attention on ln1(x) ----------------
    xn = layernorm(x, ln1_g[0], ln1_b[0])                              # (T, E) f32

    # Fused QKV: one (T, E) @ (E, 3E) matmul; columns are [q_h0..q_H | k.. | v..].
    qkv = jnp.dot(xn.astype(cdt), wqkv_ref[0],
                  preferred_element_type=jnp.float32)                  # (T, 3E) f32

    # Fold the attention scale into q (cheaper than scaling the (T,T) scores).
    q = jnp.transpose((qkv[:, 0 * E:1 * E] * scale).reshape(T, H, hs), (1, 0, 2))
    k = jnp.transpose(qkv[:, 1 * E:2 * E].reshape(T, H, hs), (1, 0, 2))
    v = jnp.transpose(qkv[:, 2 * E:3 * E].reshape(T, H, hs), (1, 0, 2))  # (H, T, hs)

    row = lax.broadcasted_iota(jnp.int32, (T, T), 0)
    col = lax.broadcasted_iota(jnp.int32, (T, T), 1)
    causal = (row >= col)[None, :, :]                                  # (1, T, T)

    # Batched-over-heads score matmul (MXU), softmax in f32.
    s = jnp.einsum('hqd,hkd->hqk', q.astype(cdt), k.astype(cdt),
                   preferred_element_type=jnp.float32)                 # (H, T, T)
    s = jnp.where(causal, s, -jnp.inf)
    m = jnp.max(s, axis=-1, keepdims=True)
    p = jnp.exp(s - m)
    denom = jnp.sum(p, axis=-1, keepdims=True)
    w = p * pl.reciprocal(denom, approx=True)                          # (H, T, T)

    o = jnp.einsum('hqk,hkd->hqd', w.astype(cdt), v.astype(cdt),
                   preferred_element_type=jnp.float32)                 # (H, T, hs)
    # Head concat (== torch.cat over heads) then one dense output projection.
    o_cat = jnp.transpose(o, (1, 0, 2)).reshape(T, E)                  # (T, E)
    sa = jnp.dot(o_cat.astype(cdt), wp_ref[0],
                 preferred_element_type=jnp.float32) + bp_ref[0]

    x = x + sa                                                         # residual 1

    # ---------------- feed-forward on ln2(x) ----------------
    xn2 = layernorm(x, ln2_g[0], ln2_b[0])
    h1 = jnp.dot(xn2.astype(cdt), w1_ref[0],
                 preferred_element_type=jnp.float32) + b1_ref[0]
    h1 = jnp.maximum(h1, 0.0)
    ff = jnp.dot(h1.astype(cdt), w2_ref[0],
                 preferred_element_type=jnp.float32) + b2_ref[0]

    x = x + ff                                                         # residual 2
    x_scratch[...] = x

    # Final LayerNorm fused here (hoisted out of the vocab-tiled lm_head).
    @pl.when(l == n_layer - 1)
    def _():
        xf = x_scratch[...]
        out_ref[0] = layernorm(xf, lnf_g[...], lnf_b[...])

    # TODO(synk): for long sequences, replace the dense (H,T,T) score matrix
    # with a KV-tiled online-softmax (flash-style) loop and causal tile skip.


# ----------------------------------------------------------------------------
# Kernel 2: lm_head projection to vocab logits, tiled over the vocab dim so
#           the (E, V) weight streams through VMEM (the input is already
#           ln_f-normalized by the decoder kernel).
# ----------------------------------------------------------------------------
def _head_kernel(x_ref, w_ref, b_ref, out_ref):
    x = x_ref[0]                                                       # (T, E) f32
    out_ref[0] = (jnp.dot(x.astype(w_ref.dtype), w_ref[...],
                          preferred_element_type=jnp.float32)
                  + b_ref[...])


def _pick_vocab_tile(V, max_tile=4096):
    """Vocab tile: full V if small, else the largest 128-multiple divisor."""
    if V <= max_tile:
        return V
    for tv in range(max_tile, 127, -128):
        if V % tv == 0:
            return tv
    return V  # no nice divisor: fall back to the full (untiled) weight


def lm_head(xn, w, b, compute_dtype):
    B, T, E = xn.shape
    V = w.shape[1]
    TV = _pick_vocab_tile(V)
    nv = V // TV
    # NOTE: for large V / TV on v6e, raise vmem_limit_bytes via
    # pltpu.CompilerParams(vmem_limit_bytes=...) so bigger weight tiles
    # double-buffer; defaults are ample for this test config.
    return pl.pallas_call(
        _head_kernel,
        out_shape=jax.ShapeDtypeStruct((B, T, V), jnp.float32),
        grid=(B, nv),
        in_specs=[pl.BlockSpec((1, T, E), lambda bb, j: (bb, 0, 0)),
                  pl.BlockSpec((E, TV), lambda bb, j: (0, j)),
                  pl.BlockSpec((1, TV), lambda bb, j: (0, j))],
        out_specs=pl.BlockSpec((1, T, TV), lambda bb, j: (bb, 0, j)),
        compiler_params=pltpu.CompilerParams(
            dimension_semantics=("parallel", "parallel")),
    )(xn, w.astype(compute_dtype), b)


# ----------------------------------------------------------------------------
# Host-side weight packing (fuse per-head QKV, stack layers).
# ----------------------------------------------------------------------------
def _fuse_qkv(wq, wk, wv):
    """(H, E, hs) x3  ->  (E, 3E) with columns [q_h0..q_H | k_h0.. | v_h0..]."""
    H, E, hs = wq.shape

    def flat(w):
        return jnp.transpose(w, (1, 0, 2)).reshape(E, H * hs)

    return jnp.concatenate([flat(wq), flat(wk), flat(wv)], axis=-1)


# ----------------------------------------------------------------------------
# Full model forward (embedding lookup / loss are plain-JAX glue).
# ----------------------------------------------------------------------------
def transformer_decoder_forward(idx, params, targets=None,
                                compute_dtype=jnp.bfloat16):
    B, T = idx.shape
    E = params["tok_emb"].shape[1]
    blocks = params["blocks"]
    L = len(blocks)
    H = blocks[0]["wq"].shape[0]

    # Plain-JAX glue: embedding gathers.
    x = (params["tok_emb"][idx] + params["pos_emb"][:T][None]).astype(jnp.float32)

    # Stack per-layer weights along a leading layer axis; matmul weights in
    # compute_dtype (bf16 for the MXU), LN params / biases stay f32.
    def stack(name, dtype=jnp.float32):
        return jnp.stack([b[name] for b in blocks]).astype(dtype)

    wqkv = jnp.stack([_fuse_qkv(b["wq"], b["wk"], b["wv"]) for b in blocks]
                     ).astype(compute_dtype)                 # (L, E, 3E)
    layer_args = (
        stack("ln1_g"), stack("ln1_b"),
        wqkv,
        stack("wp", compute_dtype), stack("bp"),
        stack("ln2_g"), stack("ln2_b"),
        stack("w1", compute_dtype), stack("b1"),
        stack("w2", compute_dtype), stack("b2"),
    )

    def layer_spec(arr):
        nd = arr.ndim
        return pl.BlockSpec((1,) + arr.shape[1:],
                            lambda b, l, _nd=nd: (l,) + (0,) * (_nd - 1))

    lnf_spec = pl.BlockSpec((1, E), lambda b, l: (0, 0))

    xn = pl.pallas_call(
        functools.partial(_decoder_kernel, H),
        out_shape=jax.ShapeDtypeStruct((B, T, E), jnp.float32),
        grid=(B, L),
        in_specs=[pl.BlockSpec((1, T, E), lambda b, l: (b, 0, 0))]
                 + [layer_spec(a) for a in layer_args]
                 + [lnf_spec, lnf_spec],
        out_specs=pl.BlockSpec((1, T, E), lambda b, l: (b, 0, 0)),
        scratch_shapes=[pltpu.VMEM((T, E), jnp.float32)],
        compiler_params=pltpu.CompilerParams(
            dimension_semantics=("parallel", "arbitrary")),
    )(x, *layer_args, params["lnf_g"], params["lnf_b"])

    logits = lm_head(xn, params["lm_w"], params["lm_b"], compute_dtype)

    if targets is not None:
        # Plain-JAX glue for the training loss path (not a Pallas kernel).
        V = logits.shape[-1]
        logp = jax.nn.log_softmax(logits.reshape(-1, V), axis=-1)
        nll = -jnp.take_along_axis(logp, targets.reshape(-1, 1), axis=1)
        loss = jnp.mean(nll)
    else:
        loss = None
    return logits, loss


# ----------------------------------------------------------------------------
# Pure-JAX reference (for correctness check).
# ----------------------------------------------------------------------------
def _ref_forward(idx, params):
    def ln(v, g, b):
        mu = v.mean(-1, keepdims=True)
        var = ((v - mu) ** 2).mean(-1, keepdims=True)
        return (v - mu) / jnp.sqrt(var + LN_EPS) * g[0] + b[0]

    B, T = idx.shape
    x = params["tok_emb"][idx] + params["pos_emb"][:T][None]
    for p in params["blocks"]:
        E = x.shape[-1]
        xn = ln(x, p["ln1_g"], p["ln1_b"])
        H = p["wq"].shape[0]
        mask = jnp.tril(jnp.ones((T, T), bool))
        heads = []
        for h in range(H):
            q = xn @ p["wq"][h]
            k = xn @ p["wk"][h]
            v = xn @ p["wv"][h]
            s = (q @ jnp.swapaxes(k, -1, -2)) * (E ** -0.5)
            s = jnp.where(mask, s, -jnp.inf)
            w = jax.nn.softmax(s, axis=-1)
            heads.append(w @ v)
        sa = jnp.concatenate(heads, -1) @ p["wp"] + p["bp"][0]
        x = x + sa
        xn2 = ln(x, p["ln2_g"], p["ln2_b"])
        ff = jnp.maximum(xn2 @ p["w1"] + p["b1"][0], 0.0) @ p["w2"] + p["b2"][0]
        x = x + ff
    xn = ln(x, params["lnf_g"], params["lnf_b"])
    return xn @ params["lm_w"] + params["lm_b"][0]


# ----------------------------------------------------------------------------
# Deterministic parameter init.
# ----------------------------------------------------------------------------
def init_params(key, vocab_len, n_embed, n_heads, n_layer, block_size):
    hs = n_embed // n_heads
    keys = iter(jax.random.split(key, 16 + 32 * n_layer))

    def nrm(shape, scale=0.02):
        return (jax.random.normal(next(keys), shape, jnp.float32) * scale)

    params = {
        "tok_emb": nrm((vocab_len, n_embed)),
        "pos_emb": nrm((block_size, n_embed)),
        "lnf_g": jnp.ones((1, n_embed), jnp.float32),
        "lnf_b": jnp.zeros((1, n_embed), jnp.float32),
        "lm_w": nrm((n_embed, vocab_len)),
        "lm_b": nrm((1, vocab_len)),
        "blocks": [],
    }
    for _ in range(n_layer):
        params["blocks"].append({
            "ln1_g": jnp.ones((1, n_embed), jnp.float32),
            "ln1_b": jnp.zeros((1, n_embed), jnp.float32),
            "wq": nrm((n_heads, n_embed, hs)),
            "wk": nrm((n_heads, n_embed, hs)),
            "wv": nrm((n_heads, n_embed, hs)),
            "wp": nrm((n_embed, n_embed)),
            "bp": nrm((1, n_embed)),
            "ln2_g": jnp.ones((1, n_embed), jnp.float32),
            "ln2_b": jnp.zeros((1, n_embed), jnp.float32),
            "w1": nrm((n_embed, 4 * n_embed)),
            "b1": nrm((1, 4 * n_embed)),
            "w2": nrm((4 * n_embed, n_embed)),
            "b2": nrm((1, n_embed)),
        })
    return params


if __name__ == "__main__":
    VOCAB, N_EMBED, N_HEADS, N_LAYER, BLOCK_SIZE = 64, 32, 4, 2, 8
    B, T = 2, 8

    key = jax.random.PRNGKey(0)
    pkey, ikey = jax.random.split(key)
    params = init_params(pkey, VOCAB, N_EMBED, N_HEADS, N_LAYER, BLOCK_SIZE)
    idx = jax.random.randint(ikey, (B, T), 0, VOCAB, dtype=jnp.int32)

    # Primary (optimized) path: bf16 matmuls, f32 accumulation.
    logits, loss = transformer_decoder_forward(idx, params)
    logits = jax.block_until_ready(logits)

    ref = _ref_forward(idx, params)
    assert logits.shape == (B, T, VOCAB)
    assert loss is None
    err = float(jnp.max(jnp.abs(logits - ref)))
    assert jnp.allclose(logits, ref, atol=3e-2, rtol=3e-2), (
        f"bf16 kernel mismatch vs reference (max abs err {err})")

    # Structural check at full f32 matmul precision (tight tolerance).
    logits_f32, _ = transformer_decoder_forward(
        idx, params, compute_dtype=jnp.float32)
    logits_f32 = jax.block_until_ready(logits_f32)
    assert jnp.allclose(logits_f32, ref, atol=2e-3, rtol=2e-3), "f32 mismatch"

    print("KERNEL_OK")
</pallas_src>

<mosaic_0001>
module attributes {stable_mosaic.version = 11 : i64} {
  func.func @_decoder_kernel(%arg0: i32, %arg1: i32, %arg2: memref<1x8x32xf32, #tpu.memory_space<vmem>>, %arg3: memref<1x1x32xf32, #tpu.memory_space<vmem>>, %arg4: memref<1x1x32xf32, #tpu.memory_space<vmem>>, %arg5: memref<1x32x96xbf16, #tpu.memory_space<vmem>>, %arg6: memref<1x32x32xbf16, #tpu.memory_space<vmem>>, %arg7: memref<1x1x32xf32, #tpu.memory_space<vmem>>, %arg8: memref<1x1x32xf32, #tpu.memory_space<vmem>>, %arg9: memref<1x1x32xf32, #tpu.memory_space<vmem>>, %arg10: memref<1x32x128xbf16, #tpu.memory_space<vmem>>, %arg11: memref<1x1x128xf32, #tpu.memory_space<vmem>>, %arg12: memref<1x128x32xbf16, #tpu.memory_space<vmem>>, %arg13: memref<1x1x32xf32, #tpu.memory_space<vmem>>, %arg14: memref<1x32xf32, #tpu.memory_space<vmem>>, %arg15: memref<1x32xf32, #tpu.memory_space<vmem>>, %arg16: memref<1x8x32xf32, #tpu.memory_space<vmem>>, %arg17: memref<8x32xf32, #tpu.memory_space<vmem>>) attributes {dimension_semantics = [#tpu.dimension_semantics<parallel>, #tpu.dimension_semantics<arbitrary>], iteration_bounds = array<i64: 2, 2>, scalar_prefetch = 0 : i64, scratch_operands = 1 : i64, tpu.core_type = #tpu.core_type<tc>, window_params = [{transform_indices = @transform_0, window_bounds = array<i64: 1, 8, 32>}, {transform_indices = @transform_1, window_bounds = array<i64: 1, 1, 32>}, {transform_indices = @transform_2, window_bounds = array<i64: 1, 1, 32>}, {transform_indices = @transform_3, window_bounds = array<i64: 1, 32, 96>}, {transform_indices = @transform_4, window_bounds = array<i64: 1, 32, 32>}, {transform_indices = @transform_5, window_bounds = array<i64: 1, 1, 32>}, {transform_indices = @transform_6, window_bounds = array<i64: 1, 1, 32>}, {transform_indices = @transform_7, window_bounds = array<i64: 1, 1, 32>}, {transform_indices = @transform_8, window_bounds = array<i64: 1, 32, 128>}, {transform_indices = @transform_9, window_bounds = array<i64: 1, 1, 128>}, {transform_indices = @transform_10, window_bounds = array<i64: 1, 128, 32>}, {transform_indices = @transform_11, window_bounds = array<i64: 1, 1, 32>}, {pipeline_mode = #tpu.pipeline_mode<synchronous>, transform_indices = @transform_12, window_bounds = array<i64: 1, 32>}, {pipeline_mode = #tpu.pipeline_mode<synchronous>, transform_indices = @transform_13, window_bounds = array<i64: 1, 32>}, {transform_indices = @transform_14, window_bounds = array<i64: 1, 8, 32>}]} {
    %c0_i32 = arith.constant 0 : i32
    %0 = arith.cmpi eq, %arg1, %c0_i32 : i32
    %1 = arith.extui %0 : i1 to i32
    %c0_i32_0 = arith.constant 0 : i32
    %2 = arith.cmpi ne, %1, %c0_i32_0 : i32
    scf.if %2 {
      %c0_58 = arith.constant 0 : index
      %c0_59 = arith.constant 0 : index
      %c0_60 = arith.constant 0 : index
      %129 = vector.load %arg2[%c0_58, %c0_59, %c0_60] : memref<1x8x32xf32, #tpu.memory_space<vmem>>, vector<1x8x32xf32>
      %130 = vector.shape_cast %129 : vector<1x8x32xf32> to vector<8x32xf32>
      %c0_61 = arith.constant 0 : index
      %c0_62 = arith.constant 0 : index
      %131 = vector.load %arg17[%c0_61, %c0_62] : memref<8x32xf32, #tpu.memory_space<vmem>>, vector<8x32xf32>
      tpu.vector_store %arg17[%c0_61, %c0_62], %130 {strides = array<i32>} : memref<8x32xf32, #tpu.memory_space<vmem>>, vector<8x32xf32>,
    } else {
    }
    %c0 = arith.constant 0 : index
    %c0_1 = arith.constant 0 : index
    %3 = vector.load %arg17[%c0, %c0_1] : memref<8x32xf32, #tpu.memory_space<vmem>>, vector<8x32xf32>
    %c0_2 = arith.constant 0 : index
    %c0_3 = arith.constant 0 : index
    %c0_4 = arith.constant 0 : index
    %4 = vector.load %arg3[%c0_2, %c0_3, %c0_4] : memref<1x1x32xf32, #tpu.memory_space<vmem>>, vector<1x1x32xf32>
    %5 = vector.shape_cast %4 : vector<1x1x32xf32> to vector<1x32xf32>
    %c0_5 = arith.constant 0 : index
    %c0_6 = arith.constant 0 : index
    %c0_7 = arith.constant 0 : index
    %6 = vector.load %arg4[%c0_5, %c0_6, %c0_7] : memref<1x1x32xf32, #tpu.memory_space<vmem>>, vector<1x1x32xf32>
    %7 = vector.shape_cast %6 : vector<1x1x32xf32> to vector<1x32xf32>
    %cst = arith.constant dense<0.000000e+00> : vector<8xf32>
    %8 = vector.multi_reduction <add>, %3, %cst [1] : vector<8x32xf32> to vector<8xf32>
    %9 = vector.shape_cast %8 : vector<8xf32> to vector<8x1xf32>
    %cst_8 = arith.constant 3.200000e+01 : f32
    %10 = vector.broadcast %cst_8 : f32 to vector<8x1xf32>
    %11 = arith.divf %9, %10 : vector<8x1xf32>
    %12 = vector.broadcast %11 : vector<8x1xf32> to vector<8x32xf32>
    %13 = arith.subf %3, %12 : vector<8x32xf32>
    %14 = arith.mulf %13, %13 : vector<8x32xf32>
    %cst_9 = arith.constant dense<0.000000e+00> : vector<8xf32>
    %15 = vector.multi_reduction <add>, %14, %cst_9 [1] : vector<8x32xf32> to vector<8xf32>
    %16 = vector.shape_cast %15 : vector<8xf32> to vector<8x1xf32>
    %cst_10 = arith.constant 3.200000e+01 : f32
    %17 = vector.broadcast %cst_10 : f32 to vector<8x1xf32>
    %18 = arith.divf %16, %17 : vector<8x1xf32>
    %19 = vector.broadcast %11 : vector<8x1xf32> to vector<8x32xf32>
    %20 = arith.subf %3, %19 : vector<8x32xf32>
    %cst_11 = arith.constant 9.99999974E-6 : f32
    %21 = vector.broadcast %cst_11 : f32 to vector<8x1xf32>
    %22 = arith.addf %18, %21 : vector<8x1xf32>
    %23 = math.rsqrt %22 : vector<8x1xf32>
    %24 = vector.broadcast %23 : vector<8x1xf32> to vector<8x32xf32>
    %25 = arith.mulf %20, %24 : vector<8x32xf32>
    %26 = vector.broadcast %5 : vector<1x32xf32> to vector<8x32xf32>
    %27 = arith.mulf %25, %26 : vector<8x32xf32>
    %28 = vector.broadcast %7 : vector<1x32xf32> to vector<8x32xf32>
    %29 = arith.addf %27, %28 : vector<8x32xf32>
    %30 = arith.truncf %29 : vector<8x32xf32> to vector<8x32xbf16>
    %c0_12 = arith.constant 0 : index
    %c0_13 = arith.constant 0 : index
    %c0_14 = arith.constant 0 : index
    %31 = vector.load %arg5[%c0_12, %c0_13, %c0_14] : memref<1x32x96xbf16, #tpu.memory_space<vmem>>, vector<1x32x96xbf16>
    %32 = vector.shape_cast %31 : vector<1x32x96xbf16> to vector<32x96xbf16>
    %cst_15 = arith.constant dense<0.000000e+00> : vector<8x96xf32>
    %33 = tpu.matmul %30, %32, %cst_15 {dimension_numbers = #tpu.dot_dimension_numbers<[1], [0], [0], [1], [0, 0, 1, 1], [], []>} : vector<8x32xbf16>, vector<32x96xbf16>, vector<8x96xf32> -> vector<8x96xf32>
    %34 = vector.extract_strided_slice %33 {offsets = [0, 0], sizes = [8, 32], strides = [1, 1]} : vector<8x96xf32> to vector<8x32xf32>
    %cst_16 = arith.constant 0.176776692 : f32
    %35 = vector.broadcast %cst_16 : f32 to vector<8x32xf32>
    %36 = arith.mulf %34, %35 : vector<8x32xf32>
    %37 = vector.shape_cast %36 : vector<8x32xf32> to vector<8x4x8xf32>
    %38 = tpu.transpose %37, [1, 0, 2] : vector<8x4x8xf32> -> vector<4x8x8xf32>
    %39 = vector.extract_strided_slice %33 {offsets = [0, 32], sizes = [8, 32], strides = [1, 1]} : vector<8x96xf32> to vector<8x32xf32>
    %40 = vector.shape_cast %39 : vector<8x32xf32> to vector<8x4x8xf32>
    %41 = tpu.transpose %40, [1, 0, 2] : vector<8x4x8xf32> -> vector<4x8x8xf32>
    %42 = vector.extract_strided_slice %33 {offsets = [0, 64], sizes = [8, 32], strides = [1, 1]} : vector<8x96xf32> to vector<8x32xf32>
    %43 = vector.shape_cast %42 : vector<8x32xf32> to vector<8x4x8xf32>
    %44 = tpu.transpose %43, [1, 0, 2] : vector<8x4x8xf32> -> vector<4x8x8xf32>
    %45 = tpu.iota {dimensions = array<i32: 0>} : vector<8x8xi32>
    %46 = tpu.iota {dimensions = array<i32: 1>} : vector<8x8xi32>
    %47 = arith.cmpi sge, %45, %46 : vector<8x8xi32>
    %48 = vector.shape_cast %47 : vector<8x8xi1> to vector<1x8x8xi1>
    %49 = arith.truncf %38 : vector<4x8x8xf32> to vector<4x8x8xbf16>
    %50 = arith.truncf %41 : vector<4x8x8xf32> to vector<4x8x8xbf16>
    "tpu.trace_start"() <{level = 10 : i32, message = "hqd,hkd->hqk"}> : () -> ()
    %cst_17 = arith.constant dense<0.000000e+00> : vector<4x8x8xf32>
    %51 = tpu.matmul %49, %50, %cst_17 {dimension_numbers = #tpu.dot_dimension_numbers<[2], [2], [1], [1], [0, 0, 0, 1, 1, 1], [0], [0]>} : vector<4x8x8xbf16>, vector<4x8x8xbf16>, vector<4x8x8xf32> -> vector<4x8x8xf32>
    %cst_18 = arith.constant 0xFF800000 : f32
    "tpu.trace_stop"() : () -> ()
    %52 = vector.shape_cast %48 : vector<1x8x8xi1> to vector<1x8x8xi1>
    %53 = vector.broadcast %52 : vector<1x8x8xi1> to vector<4x8x8xi1>
    %54 = vector.broadcast %cst_18 : f32 to vector<4x8x8xf32>
    %55 = arith.select %53, %51, %54 : vector<4x8x8xi1>, vector<4x8x8xf32>
    %cst_19 = arith.constant dense<0xFF800000> : vector<4x8xf32>
    %56 = vector.multi_reduction <maximumf>, %55, %cst_19 [2] : vector<4x8x8xf32> to vector<4x8xf32>
    %57 = vector.shape_cast %56 : vector<4x8xf32> to vector<4x8x1xf32>
    %58 = vector.broadcast %57 : vector<4x8x1xf32> to vector<4x8x8xf32>
    %59 = arith.subf %55, %58 : vector<4x8x8xf32>
    %60 = math.exp %59 : vector<4x8x8xf32>
    %cst_20 = arith.constant dense<0.000000e+00> : vector<4x8xf32>
    %61 = vector.multi_reduction <add>, %60, %cst_20 [2] : vector<4x8x8xf32> to vector<4x8xf32>
    %62 = vector.shape_cast %61 : vector<4x8xf32> to vector<4x8x1xf32>
    %63 = tpu.reciprocal %62 {approx = true} : vector<4x8x1xf32> -> vector<4x8x1xf32>
    %64 = vector.broadcast %63 : vector<4x8x1xf32> to vector<4x8x8xf32>
    %65 = arith.mulf %60, %64 : vector<4x8x8xf32>
    %66 = arith.truncf %65 : vector<4x8x8xf32> to vector<4x8x8xbf16>
    %67 = arith.truncf %44 : vector<4x8x8xf32> to vector<4x8x8xbf16>
    "tpu.trace_start"() <{level = 10 : i32, message = "hqk,hkd->hqd"}> : () -> ()
    %cst_21 = arith.constant dense<0.000000e+00> : vector<4x8x8xf32>
    %68 = tpu.matmul %66, %67, %cst_21 {dimension_numbers = #tpu.dot_dimension_numbers<[2], [1], [1], [2], [0, 0, 0, 1, 1, 2], [0], [0]>} : vector<4x8x8xbf16>, vector<4x8x8xbf16>, vector<4x8x8xf32> -> vector<4x8x8xf32>
    "tpu.trace_stop"() : () -> ()
    %69 = tpu.transpose %68, [1, 0, 2] : vector<4x8x8xf32> -> vector<8x4x8xf32>
    %70 = vector.shape_cast %69 : vector<8x4x8xf32> to vector<8x32xf32>
    %71 = arith.truncf %70 : vector<8x32xf32> to vector<8x32xbf16>
    %c0_22 = arith.constant 0 : index
    %c0_23 = arith.constant 0 : index
    %c0_24 = arith.constant 0 : index
    %72 = vector.load %arg6[%c0_22, %c0_23, %c0_24] : memref<1x32x32xbf16, #tpu.memory_space<vmem>>, vector<1x32x32xbf16>
    %73 = vector.shape_cast %72 : vector<1x32x32xbf16> to vector<32x32xbf16>
    %cst_25 = arith.constant dense<0.000000e+00> : vector<8x32xf32>
    %74 = tpu.matmul %71, %73, %cst_25 {dimension_numbers = #tpu.dot_dimension_numbers<[1], [0], [0], [1], [0, 0, 1, 1], [], []>} : vector<8x32xbf16>, vector<32x32xbf16>, vector<8x32xf32> -> vector<8x32xf32>
    %c0_26 = arith.constant 0 : index
    %c0_27 = arith.constant 0 : index
    %c0_28 = arith.constant 0 : index
    %75 = vector.load %arg7[%c0_26, %c0_27, %c0_28] : memref<1x1x32xf32, #tpu.memory_space<vmem>>, vector<1x1x32xf32>
    %76 = vector.shape_cast %75 : vector<1x1x32xf32> to vector<1x32xf32>
    %77 = vector.broadcast %76 : vector<1x32xf32> to vector<8x32xf32>
    %78 = arith.addf %74, %77 : vector<8x32xf32>
    %79 = arith.addf %3, %78 : vector<8x32xf32>
    %c0_29 = arith.constant 0 : index
    %c0_30 = arith.constant 0 : index
    %c0_31 = arith.constant 0 : index
    %80 = vector.load %arg8[%c0_29, %c0_30, %c0_31] : memref<1x1x32xf32, #tpu.memory_space<vmem>>, vector<1x1x32xf32>
    %81 = vector.shape_cast %80 : vector<1x1x32xf32> to vector<1x32xf32>
    %c0_32 = arith.constant 0 : index
    %c0_33 = arith.constant 0 : index
    %c0_34 = arith.constant 0 : index
    %82 = vector.load %arg9[%c0_32, %c0_33, %c0_34] : memref<1x1x32xf32, #tpu.memory_space<vmem>>, vector<1x1x32xf32>
    %83 = vector.shape_cast %82 : vector<1x1x32xf32> to vector<1x32xf32>
    %cst_35 = arith.constant dense<0.000000e+00> : vector<8xf32>
    %84 = vector.multi_reduction <add>, %79, %cst_35 [1] : vector<8x32xf32> to vector<8xf32>
    %85 = vector.shape_cast %84 : vector<8xf32> to vector<8x1xf32>
    %cst_36 = arith.constant 3.200000e+01 : f32
    %86 = vector.broadcast %cst_36 : f32 to vector<8x1xf32>
    %87 = arith.divf %85, %86 : vector<8x1xf32>
    %88 = vector.broadcast %87 : vector<8x1xf32> to vector<8x32xf32>
    %89 = arith.subf %79, %88 : vector<8x32xf32>
    %90 = arith.mulf %89, %89 : vector<8x32xf32>
    %cst_37 = arith.constant dense<0.000000e+00> : vector<8xf32>
    %91 = vector.multi_reduction <add>, %90, %cst_37 [1] : vector<8x32xf32> to vector<8xf32>
    %92 = vector.shape_cast %91 : vector<8xf32> to vector<8x1xf32>
    %cst_38 = arith.constant 3.200000e+01 : f32
    %93 = vector.broadcast %cst_38 : f32 to vector<8x1xf32>
    %94 = arith.divf %92, %93 : vector<8x1xf32>
    %95 = vector.broadcast %87 : vector<8x1xf32> to vector<8x32xf32>
    %96 = arith.subf %79, %95 : vector<8x32xf32>
    %cst_39 = arith.constant 9.99999974E-6 : f32
    %97 = vector.broadcast %cst_39 : f32 to vector<8x1xf32>
    %98 = arith.addf %94, %97 : vector<8x1xf32>
    %99 = math.rsqrt %98 : vector<8x1xf32>
    %100 = vector.broadcast %99 : vector<8x1xf32> to vector<8x32xf32>
    %101 = arith.mulf %96, %100 : vector<8x32xf32>
    %102 = vector.broadcast %81 : vector<1x32xf32> to vector<8x32xf32>
    %103 = arith.mulf %101, %102 : vector<8x32xf32>
    %104 = vector.broadcast %83 : vector<1x32xf32> to vector<8x32xf32>
    %105 = arith.addf %103, %104 : vector<8x32xf32>
    %106 = arith.truncf %105 : vector<8x32xf32> to vector<8x32xbf16>
    %c0_40 = arith.constant 0 : index
    %c0_41 = arith.constant 0 : index
    %c0_42 = arith.constant 0 : index
    %107 = vector.load %arg10[%c0_40, %c0_41, %c0_42] : memref<1x32x128xbf16, #tpu.memory_space<vmem>>, vector<1x32x128xbf16>
    %108 = vector.shape_cast %107 : vector<1x32x128xbf16> to vector<32x128xbf16>
    %cst_43 = arith.constant dense<0.000000e+00> : vector<8x128xf32>
    %109 = tpu.matmul %106, %108, %cst_43 {dimension_numbers = #tpu.dot_dimension_numbers<[1], [0], [0], [1], [0, 0, 1, 1], [], []>} : vector<8x32xbf16>, vector<32x128xbf16>, vector<8x128xf32> -> vector<8x128xf32>
    %c0_44 = arith.constant 0 : index
    %c0_45 = arith.constant 0 : index
    %c0_46 = arith.constant 0 : index
    %110 = vector.load %arg11[%c0_44, %c0_45, %c0_46] : memref<1x1x128xf32, #tpu.memory_space<vmem>>, vector<1x1x128xf32>
    %111 = vector.shape_cast %110 : vector<1x1x128xf32> to vector<1x128xf32>
    %112 = vector.broadcast %111 : vector<1x128xf32> to vector<8x128xf32>
    %113 = arith.addf %109, %112 : vector<8x128xf32>
    %cst_47 = arith.constant 0.000000e+00 : f32
    %114 = vector.broadcast %cst_47 : f32 to vector<8x128xf32>
    %115 = arith.maximumf %113, %114 : vector<8x128xf32>
    %116 = arith.truncf %115 : vector<8x128xf32> to vector<8x128xbf16>
    %c0_48 = arith.constant 0 : index
    %c0_49 = arith.constant 0 : index
    %c0_50 = arith.constant 0 : index
    %117 = vector.load %arg12[%c0_48, %c0_49, %c0_50] : memref<1x128x32xbf16, #tpu.memory_space<vmem>>, vector<1x128x32xbf16>
    %118 = vector.shape_cast %117 : vector<1x128x32xbf16> to vector<128x32xbf16>
    %cst_51 = arith.constant dense<0.000000e+00> : vector<8x32xf32>
    %119 = tpu.matmul %116, %118, %cst_51 {dimension_numbers = #tpu.dot_dimension_numbers<[1], [0], [0], [1], [0, 0, 1, 1], [], []>} : vector<8x128xbf16>, vector<128x32xbf16>, vector<8x32xf32> -> vector<8x32xf32>
    %c0_52 = arith.constant 0 : index
    %c0_53 = arith.constant 0 : index
    %c0_54 = arith.constant 0 : index
    %120 = vector.load %arg13[%c0_52, %c0_53, %c0_54] : memref<1x1x32xf32, #tpu.memory_space<vmem>>, vector<1x1x32xf32>
    %121 = vector.shape_cast %120 : vector<1x1x32xf32> to vector<1x32xf32>
    %122 = vector.broadcast %121 : vector<1x32xf32> to vector<8x32xf32>
    %123 = arith.addf %119, %122 : vector<8x32xf32>
    %124 = arith.addf %79, %123 : vector<8x32xf32>
    %c0_55 = arith.constant 0 : index
    %c0_56 = arith.constant 0 : index
    %125 = vector.load %arg17[%c0_55, %c0_56] : memref<8x32xf32, #tpu.memory_space<vmem>>, vector<8x32xf32>
    tpu.vector_store %arg17[%c0_55, %c0_56], %124 {strides = array<i32>} : memref<8x32xf32, #tpu.memory_space<vmem>>, vector<8x32xf32>,
    %c1_i32 = arith.constant 1 : i32
    %126 = arith.cmpi eq, %arg1, %c1_i32 : i32
    %127 = arith.extui %126 : i1 to i32
    %c0_i32_57 = arith.constant 0 : i32
    %128 = arith.cmpi ne, %127, %c0_i32_57 : i32
    scf.if %128 {
      %c0_58 = arith.constant 0 : index
      %c0_59 = arith.constant 0 : index
      %129 = vector.load %arg17[%c0_58, %c0_59] : memref<8x32xf32, #tpu.memory_space<vmem>>, vector<8x32xf32>
      %c0_60 = arith.constant 0 : index
      %c0_61 = arith.constant 0 : index
      %130 = vector.load %arg14[%c0_60, %c0_61] : memref<1x32xf32, #tpu.memory_space<vmem>>, vector<1x32xf32>
      %c0_62 = arith.constant 0 : index
      %c0_63 = arith.constant 0 : index
      %131 = vector.load %arg15[%c0_62, %c0_63] : memref<1x32xf32, #tpu.memory_space<vmem>>, vector<1x32xf32>
      %cst_64 = arith.constant dense<0.000000e+00> : vector<8xf32>
      %132 = vector.multi_reduction <add>, %129, %cst_64 [1] : vector<8x32xf32> to vector<8xf32>
      %133 = vector.shape_cast %132 : vector<8xf32> to vector<8x1xf32>
      %cst_65 = arith.constant 3.200000e+01 : f32
      %134 = vector.broadcast %cst_65 : f32 to vector<8x1xf32>
      %135 = arith.divf %133, %134 : vector<8x1xf32>
      %136 = vector.broadcast %135 : vector<8x1xf32> to vector<8x32xf32>
      %137 = arith.subf %129, %136 : vector<8x32xf32>
      %138 = arith.mulf %137, %137 : vector<8x32xf32>
      %cst_66 = arith.constant dense<0.000000e+00> : vector<8xf32>
      %139 = vector.multi_reduction <add>, %138, %cst_66 [1] : vector<8x32xf32> to vector<8xf32>
      %140 = vector.shape_cast %139 : vector<8xf32> to vector<8x1xf32>
      %cst_67 = arith.constant 3.200000e+01 : f32
      %141 = vector.broadcast %cst_67 : f32 to vector<8x1xf32>
      %142 = arith.divf %140, %141 : vector<8x1xf32>
      %143 = vector.broadcast %135 : vector<8x1xf32> to vector<8x32xf32>
      %144 = arith.subf %129, %143 : vector<8x32xf32>
      %cst_68 = arith.constant 9.99999974E-6 : f32
      %145 = vector.broadcast %cst_68 : f32 to vector<8x1xf32>
      %146 = arith.addf %142, %145 : vector<8x1xf32>
      %147 = math.rsqrt %146 : vector<8x1xf32>
      %148 = vector.broadcast %147 : vector<8x1xf32> to vector<8x32xf32>
      %149 = arith.mulf %144, %148 : vector<8x32xf32>
      %150 = vector.broadcast %130 : vector<1x32xf32> to vector<8x32xf32>
      %151 = arith.mulf %149, %150 : vector<8x32xf32>
      %152 = vector.broadcast %131 : vector<1x32xf32> to vector<8x32xf32>
      %153 = arith.addf %151, %152 : vector<8x32xf32>
      %c0_69 = arith.constant 0 : index
      %c0_70 = arith.constant 0 : index
      %c0_71 = arith.constant 0 : index
      %154 = vector.load %arg16[%c0_69, %c0_70, %c0_71] : memref<1x8x32xf32, #tpu.memory_space<vmem>>, vector<1x8x32xf32>
      %155 = vector.shape_cast %154 : vector<1x8x32xf32> to vector<8x32xf32>
      %156 = vector.shape_cast %153 : vector<8x32xf32> to vector<1x8x32xf32>
      tpu.vector_store %arg16[%c0_69, %c0_70, %c0_71], %156 {strides = array<i32>} : memref<1x8x32xf32, #tpu.memory_space<vmem>>, vector<1x8x32xf32>,
    } else {
    }
    return
  }
  func.func @transform_0(%arg0: i32, %arg1: i32) -> (i32, i32, i32) {
    %c0_i32 = arith.constant 0 : i32
    %c0_i32_0 = arith.constant 0 : i32
    %c0_i32_1 = arith.constant 0 : i32
    return %arg0, %c0_i32, %c0_i32_0 : i32, i32, i32
  }
  func.func @transform_1(%arg0: i32, %arg1: i32) -> (i32, i32, i32) {
    %c0_i32 = arith.constant 0 : i32
    %c0_i32_0 = arith.constant 0 : i32
    %c0_i32_1 = arith.constant 0 : i32
    return %arg1, %c0_i32, %c0_i32_0 : i32, i32, i32
  }
  func.func @transform_2(%arg0: i32, %arg1: i32) -> (i32, i32, i32) {
    %c0_i32 = arith.constant 0 : i32
    %c0_i32_0 = arith.constant 0 : i32
    %c0_i32_1 = arith.constant 0 : i32
    return %arg1, %c0_i32, %c0_i32_0 : i32, i32, i32
  }
  func.func @transform_3(%arg0: i32, %arg1: i32) -> (i32, i32, i32) {
    %c0_i32 = arith.constant 0 : i32
    %c0_i32_0 = arith.constant 0 : i32
    %c0_i32_1 = arith.constant 0 : i32
    return %arg1, %c0_i32, %c0_i32_0 : i32, i32, i32
  }
  func.func @transform_4(%arg0: i32, %arg1: i32) -> (i32, i32, i32) {
    %c0_i32 = arith.constant 0 : i32
    %c0_i32_0 = arith.constant 0 : i32
    %c0_i32_1 = arith.constant 0 : i32
    return %arg1, %c0_i32, %c0_i32_0 : i32, i32, i32
  }
  func.func @transform_5(%arg0: i32, %arg1: i32) -> (i32, i32, i32) {
    %c0_i32 = arith.constant 0 : i32
    %c0_i32_0 = arith.constant 0 : i32
    %c0_i32_1 = arith.constant 0 : i32
    return %arg1, %c0_i32, %c0_i32_0 : i32, i32, i32
  }
  func.func @transform_6(%arg0: i32, %arg1: i32) -> (i32, i32, i32) {
    %c0_i32 = arith.constant 0 : i32
    %c0_i32_0 = arith.constant 0 : i32
    %c0_i32_1 = arith.constant 0 : i32
    return %arg1, %c0_i32, %c0_i32_0 : i32, i32, i32
  }
  func.func @transform_7(%arg0: i32, %arg1: i32) -> (i32, i32, i32) {
    %c0_i32 = arith.constant 0 : i32
    %c0_i32_0 = arith.constant 0 : i32
    %c0_i32_1 = arith.constant 0 : i32
    return %arg1, %c0_i32, %c0_i32_0 : i32, i32, i32
  }
  func.func @transform_8(%arg0: i32, %arg1: i32) -> (i32, i32, i32) {
    %c0_i32 = arith.constant 0 : i32
    %c0_i32_0 = arith.constant 0 : i32
    %c0_i32_1 = arith.constant 0 : i32
    return %arg1, %c0_i32, %c0_i32_0 : i32, i32, i32
  }
  func.func @transform_9(%arg0: i32, %arg1: i32) -> (i32, i32, i32) {
    %c0_i32 = arith.constant 0 : i32
    %c0_i32_0 = arith.constant 0 : i32
    %c0_i32_1 = arith.constant 0 : i32
    return %arg1, %c0_i32, %c0_i32_0 : i32, i32, i32
  }
  func.func @transform_10(%arg0: i32, %arg1: i32) -> (i32, i32, i32) {
    %c0_i32 = arith.constant 0 : i32
    %c0_i32_0 = arith.constant 0 : i32
    %c0_i32_1 = arith.constant 0 : i32
    return %arg1, %c0_i32, %c0_i32_0 : i32, i32, i32
  }
  func.func @transform_11(%arg0: i32, %arg1: i32) -> (i32, i32, i32) {
    %c0_i32 = arith.constant 0 : i32
    %c0_i32_0 = arith.constant 0 : i32
    %c0_i32_1 = arith.constant 0 : i32
    return %arg1, %c0_i32, %c0_i32_0 : i32, i32, i32
  }
  func.func @transform_12(%arg0: i32, %arg1: i32) -> (i32, i32) {
    %c0_i32 = arith.constant 0 : i32
    %c0_i32_0 = arith.constant 0 : i32
    %c0_i32_1 = arith.constant 0 : i32
    return %c0_i32, %c0_i32_0 : i32, i32
  }
  func.func @transform_13(%arg0: i32, %arg1: i32) -> (i32, i32) {
    %c0_i32 = arith.constant 0 : i32
    %c0_i32_0 = arith.constant 0 : i32
    %c0_i32_1 = arith.constant 0 : i32
    return %c0_i32, %c0_i32_0 : i32, i32
  }
  func.func @transform_14(%arg0: i32, %arg1: i32) -> (i32, i32, i32) {
    %c0_i32 = arith.constant 0 : i32
    %c0_i32_0 = arith.constant 0 : i32
    %c0_i32_1 = arith.constant 0 : i32
    return %arg0, %c0_i32, %c0_i32_0 : i32, i32, i32
  }
}

</mosaic_0001>

<llo_original>
// kernel: tpu_custom_call.1
$region0: #{tpu_custom_call.1}
  #allocation0 [shape = 'u32[]', space=smem, size = 0x4, offset = 0x4, fixed_abs, tag = 'smem constant byte address 0x4 - core index']
  #allocation1 [shape = 'u32[144,128]{1,0:T(1,128)}', space=vmem, size = 0x12000, scoped, tag = 'internal scratch']
  #allocation2 [shape = 'f32[8,32]{1,0:T(8,128)}', space=vmem, size = 0x1000, scoped, tag = 'scratch operand']
  %s0 = inlined_call_operand.vmem [shape: f32[2,8,32], index: 0, kind: input, shape index: {}]
  %s1 = inlined_call_operand.vmem [shape: f32[2,1,32], index: 1, kind: input, shape index: {}]
  %s2 = inlined_call_operand.vmem [shape: f32[2,1,32], index: 2, kind: input, shape index: {}]
  %s3 = inlined_call_operand.vmem [shape: bf16[2,32,96], index: 3, kind: input, shape index: {}]
  %s4 = inlined_call_operand.vmem [shape: bf16[2,32,32], index: 4, kind: input, shape index: {}]
  %s5 = inlined_call_operand.vmem [shape: f32[2,1,32], index: 5, kind: input, shape index: {}]
  %s6 = inlined_call_operand.vmem [shape: f32[2,1,32], index: 6, kind: input, shape index: {}]
  %s7 = inlined_call_operand.vmem [shape: f32[2,1,32], index: 7, kind: input, shape index: {}]
  %s8 = inlined_call_operand.vmem [shape: bf16[2,32,128], index: 8, kind: input, shape index: {}]
  %s9 = inlined_call_operand.vmem [shape: f32[2,1,128], index: 9, kind: input, shape index: {}]
  %s10 = inlined_call_operand.vmem [shape: bf16[2,128,32], index: 10, kind: input, shape index: {}]
  %s11 = inlined_call_operand.vmem [shape: f32[2,1,32], index: 11, kind: input, shape index: {}]
  %s12 = inlined_call_operand.vmem [shape: f32[1,32], index: 12, kind: input, shape index: {}]
  %s13 = inlined_call_operand.vmem [shape: f32[1,32], index: 13, kind: input, shape index: {}]
  %s14 = inlined_call_operand.hbm [shape: f32[2,8,32], index: 14, kind: output, shape index: {}]
  %s15 = sld [smem:[#allocation0]]
  $region97: #{tpu_custom_call.1} parent=0
    _
  %s17 = ssub.s32 1, %s15
  %s18 = scalar_select 0, %s17, %s15
  $region1: #{tpu_custom_call.1} parent=0
    #allocation3 [shape = 'u8[8192]{0}', space=vmem, size = 0x2000, scoped, tag = 'output window, operand 0']
    #allocation4 [shape = 's32[2]{0}', space=sflag, size = 0x8, scoped, tag = 'scoped memory for tpu_custom_call.1']
    %19 = vsyncpa [#allocation4], 0
    %s20 = scalar_lea.sflag [#allocation4], 1
    %21 = vsyncpa %s20, 0
    loop: start=0, step=1, limit=6
    $region2: #{tpu_custom_call.1} parent=1 // loop_pre_header
      _
    $region3: #{tpu_custom_call.1} parent=1 // loop_header
      %s23 = sphi 0, %s27
      %p24 = scmp.ge.s32.totalorder %s23, 6
      %s30 = sphi 0, %s42
      %s31 = sphi 0, %s38
      %s32 = sphi 0, %s30
      %s33 = sphi 0, %s31
      %s34 = sphi 0, %s32
      %s35 = sphi 0, %s33
      %s45 = sphi 0, %s47
      %s48 = sphi 0, %s45
      %s49 = sphi 0, %s48
      %s65 = sphi 0, %s49
      %s71 = sphi 0, %s73
      %s74 = sphi 0, %s71
      %s75 = sphi 0, %s74
      %s91 = sphi 0, %s75
      %s97 = sphi 0, %s99
      %s100 = sphi 0, %s97
      %s101 = sphi 0, %s100
      %s117 = sphi 0, %s101
      %s123 = sphi 0, %s125
      %s126 = sphi 0, %s123
      %s127 = sphi 0, %s126
      %s143 = sphi 0, %s127
      %s149 = sphi 0, %s151
      %s152 = sphi 0, %s149
      %s153 = sphi 0, %s152
      %s169 = sphi 0, %s153
      %s175 = sphi 0, %s177
      %s178 = sphi 0, %s175
      %s179 = sphi 0, %s178
      %s195 = sphi 0, %s179
      %s201 = sphi 0, %s203
      %s204 = sphi 0, %s201
      %s205 = sphi 0, %s204
      %s221 = sphi 0, %s205
      %s227 = sphi 0, %s229
      %s230 = sphi 0, %s227
      %s231 = sphi 0, %s230
      %s247 = sphi 0, %s231
      %s253 = sphi 0, %s255
      %s256 = sphi 0, %s253
      %s257 = sphi 0, %s256
      %s273 = sphi 0, %s257
      %s279 = sphi 0, %s281
      %s282 = sphi 0, %s279
      %s283 = sphi 0, %s282
      %s299 = sphi 0, %s283
      %s305 = sphi 0, %s307
      %s308 = sphi 0, %s305
      %s309 = sphi 0, %s308
      %s325 = sphi 0, %s309
      %s331 = sphi 0, %s333
      %s334 = sphi 0, %s331
      %s335 = sphi 0, %s334
      %s351 = sphi 0, %s335
      %s355 = sphi 0, %s355
      %s357 = sphi 0, %s355
      %s358 = sphi 0, %s357
      %s372 = sphi 0, %s358
      %s376 = sphi 0, %s376
      %s378 = sphi 0, %s376
      %s379 = sphi 0, %s378
      %s393 = sphi 0, %s379
      %s399 = sphi 0, %s401
      %s402 = sphi 0, %s399
      %s403 = sphi 0, %s402
      %s419 = sphi 0, %s403
    $region4: #{tpu_custom_call.1} parent=1 // loop_header_branch
      %26 = sbr.rel (%p24) target = $region8
    $region5: #{tpu_custom_call.1} parent=1 // loop_body
      %s28 = ssub.s32 %s23, 1
      %s29 = ssub.s32 %s23, 2
      %s36 = sadd.s32 1, %s31
      %p37 = scmp.ge.s32.totalorder %s36, 2
      %s38 = scalar_select %p37, 0, %s36
      %s39 = sadd.s32 1, %s30
      %s40 = scalar_select %p37, %s39, %s30
      %p41 = scmp.ge.s32.totalorder %s40, 2
      %s42 = scalar_select %p41, 0, %s40
      %s43 = ssub.s32 %s30, %s42
      %p44 = scmp.eq.s32.totalorder %s43, 0
      %s46 = sadd.s32 %s45, 1
      %s47 = scalar_select %p44, %s45, %s46
      %p50 = pneg %p44
      %p51 = scmp.eq.s32.totalorder %s23, 3
      %p52 = por %p50, %p51
      %p53 = scmp.ne.s32.totalorder %s45, %s48
      %p54 = scmp.eq.s32.totalorder %s23, 0
      %p55 = por %p53, %p54
      %p56 = scmp.ne.s32.totalorder %s45, %s48
      %p57 = scmp.eq.s32.totalorder %s28, 3
      %p58 = por %p56, %p57
      %p59 = scmp.ne.s32.totalorder %s48, %s49
      %p60 = scmp.eq.s32.totalorder %s28, 0
      %p61 = por %p59, %p60
      %p62 = scmp.ne.s32.totalorder %s48, %s49
      %p63 = scmp.eq.s32.totalorder %s29, 3
      %p64 = por %p62, %p63
      %p66 = scmp.ne.s32.totalorder %s49, %s65
      %p67 = scmp.eq.s32.totalorder %s29, 0
      %p68 = por %p66, %p67
      %s69 = ssub.s32 %s31, %s38
      %p70 = scmp.eq.s32.totalorder %s69, 0
      %s72 = sadd.s32 %s71, 1
      %s73 = scalar_select %p70, %s71, %s72
      %p76 = pneg %p70
      %p77 = scmp.eq.s32.totalorder %s23, 3
      %p78 = por %p76, %p77
      %p79 = scmp.ne.s32.totalorder %s71, %s74
      %p80 = scmp.eq.s32.totalorder %s23, 0
      %p81 = por %p79, %p80
      %p82 = scmp.ne.s32.totalorder %s71, %s74
      %p83 = scmp.eq.s32.totalorder %s28, 3
      %p84 = por %p82, %p83
      %p85 = scmp.ne.s32.totalorder %s74, %s75
      %p86 = scmp.eq.s32.totalorder %s28, 0
      %p87 = por %p85, %p86
      %p88 = scmp.ne.s32.totalorder %s74, %s75
      %p89 = scmp.eq.s32.totalorder %s29, 3
      %p90 = por %p88, %p89
      %p92 = scmp.ne.s32.totalorder %s75, %s91
      %p93 = scmp.eq.s32.totalorder %s29, 0
      %p94 = por %p92, %p93
      %s95 = ssub.s32 %s31, %s38
      %p96 = scmp.eq.s32.totalorder %s95, 0
      %s98 = sadd.s32 %s97, 1
      %s99 = scalar_select %p96, %s97, %s98
      %p102 = pneg %p96
      %p103 = scmp.eq.s32.totalorder %s23, 3
      %p104 = por %p102, %p103
      %p105 = scmp.ne.s32.totalorder %s97, %s100
      %p106 = scmp.eq.s32.totalorder %s23, 0
      %p107 = por %p105, %p106
      %p108 = scmp.ne.s32.totalorder %s97, %s100
      %p109 = scmp.eq.s32.totalorder %s28, 3
      %p110 = por %p108, %p109
      %p111 = scmp.ne.s32.totalorder %s100, %s101
      %p112 = scmp.eq.s32.totalorder %s28, 0
      %p113 = por %p111, %p112
      %p114 = scmp.ne.s32.totalorder %s100, %s101
      %p115 = scmp.eq.s32.totalorder %s29, 3
      %p116 = por %p114, %p115
      %p118 = scmp.ne.s32.totalorder %s101, %s117
      %p119 = scmp.eq.s32.totalorder %s29, 0
      %p120 = por %p118, %p119
      %s121 = ssub.s32 %s31, %s38
      %p122 = scmp.eq.s32.totalorder %s121, 0
      %s124 = sadd.s32 %s123, 1
      %s125 = scalar_select %p122, %s123, %s124
      %p128 = pneg %p122
      %p129 = scmp.eq.s32.totalorder %s23, 3
      %p130 = por %p128, %p129
      %p131 = scmp.ne.s32.totalorder %s123, %s126
      %p132 = scmp.eq.s32.totalorder %s23, 0
      %p133 = por %p131, %p132
      %p134 = scmp.ne.s32.totalorder %s123, %s126
      %p135 = scmp.eq.s32.totalorder %s28, 3
      %p136 = por %p134, %p135
      %p137 = scmp.ne.s32.totalorder %s126, %s127
      %p138 = scmp.eq.s32.totalorder %s28, 0
      %p139 = por %p137, %p138
      %p140 = scmp.ne.s32.totalorder %s126, %s127
      %p141 = scmp.eq.s32.totalorder %s29, 3
      %p142 = por %p140, %p141
      %p144 = scmp.ne.s32.totalorder %s127, %s143
      %p145 = scmp.eq.s32.totalorder %s29, 0
      %p146 = por %p144, %p145
      %s147 = ssub.s32 %s31, %s38
      %p148 = scmp.eq.s32.totalorder %s147, 0
      %s150 = sadd.s32 %s149, 1
      %s151 = scalar_select %p148, %s149, %s150
      %p154 = pneg %p148
      %p155 = scmp.eq.s32.totalorder %s23, 3
      %p156 = por %p154, %p155
      %p157 = scmp.ne.s32.totalorder %s149, %s152
      %p158 = scmp.eq.s32.totalorder %s23, 0
      %p159 = por %p157, %p158
      %p160 = scmp.ne.s32.totalorder %s149, %s152
      %p161 = scmp.eq.s32.totalorder %s28, 3
      %p162 = por %p160, %p161
      %p163 = scmp.ne.s32.totalorder %s152, %s153
      %p164 = scmp.eq.s32.totalorder %s28, 0
      %p165 = por %p163, %p164
      %p166 = scmp.ne.s32.totalorder %s152, %s153
      %p167 = scmp.eq.s32.totalorder %s29, 3
      %p168 = por %p166, %p167
      %p170 = scmp.ne.s32.totalorder %s153, %s169
      %p171 = scmp.eq.s32.totalorder %s29, 0
      %p172 = por %p170, %p171
      %s173 = ssub.s32 %s31, %s38
      %p174 = scmp.eq.s32.totalorder %s173, 0
      %s176 = sadd.s32 %s175, 1
      %s177 = scalar_select %p174, %s175, %s176
      %p180 = pneg %p174
      %p181 = scmp.eq.s32.totalorder %s23, 3
      %p182 = por %p180, %p181
      %p183 = scmp.ne.s32.totalorder %s175, %s178
      %p184 = scmp.eq.s32.totalorder %s23, 0
      %p185 = por %p183, %p184
      %p186 = scmp.ne.s32.totalorder %s175, %s178
      %p187 = scmp.eq.s32.totalorder %s28, 3
      %p188 = por %p186, %p187
      %p189 = scmp.ne.s32.totalorder %s178, %s179
      %p190 = scmp.eq.s32.totalorder %s28, 0
      %p191 = por %p189, %p190
      %p192 = scmp.ne.s32.totalorder %s178, %s179
      %p193 = scmp.eq.s32.totalorder %s29, 3
      %p194 = por %p192, %p193
      %p196 = scmp.ne.s32.totalorder %s179, %s195
      %p197 = scmp.eq.s32.totalorder %s29, 0
      %p198 = por %p196, %p197
      %s199 = ssub.s32 %s31, %s38
      %p200 = scmp.eq.s32.totalorder %s199, 0
      %s202 = sadd.s32 %s201, 1
      %s203 = scalar_select %p200, %s201, %s202
      %p206 = pneg %p200
      %p207 = scmp.eq.s32.totalorder %s23, 3
      %p208 = por %p206, %p207
      %p209 = scmp.ne.s32.totalorder %s201, %s204
      %p210 = scmp.eq.s32.totalorder %s23, 0
      %p211 = por %p209, %p210
      %p212 = scmp.ne.s32.totalorder %s201, %s204
      %p213 = scmp.eq.s32.totalorder %s28, 3
      %p214 = por %p212, %p213
      %p215 = scmp.ne.s32.totalorder %s204, %s205
      %p216 = scmp.eq.s32.totalorder %s28, 0
      %p217 = por %p215, %p216
      %p218 = scmp.ne.s32.totalorder %s204, %s205
      %p219 = scmp.eq.s32.totalorder %s29, 3
      %p220 = por %p218, %p219
      %p222 = scmp.ne.s32.totalorder %s205, %s221
      %p223 = scmp.eq.s32.totalorder %s29, 0
      %p224 = por %p222, %p223
      %s225 = ssub.s32 %s31, %s38
      %p226 = scmp.eq.s32.totalorder %s225, 0
      %s228 = sadd.s32 %s227, 1
      %s229 = scalar_select %p226, %s227, %s228
      %p232 = pneg %p226
      %p233 = scmp.eq.s32.totalorder %s23, 3
      %p234 = por %p232, %p233
      %p235 = scmp.ne.s32.totalorder %s227, %s230
      %p236 = scmp.eq.s32.totalorder %s23, 0
      %p237 = por %p235, %p236
      %p238 = scmp.ne.s32.totalorder %s227, %s230
      %p239 = scmp.eq.s32.totalorder %s28, 3
      %p240 = por %p238, %p239
      %p241 = scmp.ne.s32.totalorder %s230, %s231
      %p242 = scmp.eq.s32.totalorder %s28, 0
      %p243 = por %p241, %p242
      %p244 = scmp.ne.s32.totalorder %s230, %s231
      %p245 = scmp.eq.s32.totalorder %s29, 3
      %p246 = por %p244, %p245
      %p248 = scmp.ne.s32.totalorder %s231, %s247
      %p249 = scmp.eq.s32.totalorder %s29, 0
      %p250 = por %p248, %p249
      %s251 = ssub.s32 %s31, %s38
      %p252 = scmp.eq.s32.totalorder %s251, 0
      %s254 = sadd.s32 %s253, 1
      %s255 = scalar_select %p252, %s253, %s254
      %p258 = pneg %p252
      %p259 = scmp.eq.s32.totalorder %s23, 3
      %p260 = por %p258, %p259
      %p261 = scmp.ne.s32.totalorder %s253, %s256
      %p262 = scmp.eq.s32.totalorder %s23, 0
      %p263 = por %p261, %p262
      %p264 = scmp.ne.s32.totalorder %s253, %s256
      %p265 = scmp.eq.s32.totalorder %s28, 3
      %p266 = por %p264, %p265
      %p267 = scmp.ne.s32.totalorder %s256, %s257
      %p268 = scmp.eq.s32.totalorder %s28, 0
      %p269 = por %p267, %p268
      %p270 = scmp.ne.s32.totalorder %s256, %s257
      %p271 = scmp.eq.s32.totalorder %s29, 3
      %p272 = por %p270, %p271
      %p274 = scmp.ne.s32.totalorder %s257, %s273
      %p275 = scmp.eq.s32.totalorder %s29, 0
      %p276 = por %p274, %p275
      %s277 = ssub.s32 %s31, %s38
      %p278 = scmp.eq.s32.totalorder %s277, 0
      %s280 = sadd.s32 %s279, 1
      %s281 = scalar_select %p278, %s279, %s280
      %p284 = pneg %p278
      %p285 = scmp.eq.s32.totalorder %s23, 3
      %p286 = por %p284, %p285
      %p287 = scmp.ne.s32.totalorder %s279, %s282
      %p288 = scmp.eq.s32.totalorder %s23, 0
      %p289 = por %p287, %p288
      %p290 = scmp.ne.s32.totalorder %s279, %s282
      %p291 = scmp.eq.s32.totalorder %s28, 3
      %p292 = por %p290, %p291
      %p293 = scmp.ne.s32.totalorder %s282, %s283
      %p294 = scmp.eq.s32.totalorder %s28, 0
      %p295 = por %p293, %p294
      %p296 = scmp.ne.s32.totalorder %s282, %s283
      %p297 = scmp.eq.s32.totalorder %s29, 3
      %p298 = por %p296, %p297
      %p300 = scmp.ne.s32.totalorder %s283, %s299
      %p301 = scmp.eq.s32.totalorder %s29, 0
      %p302 = por %p300, %p301
      %s303 = ssub.s32 %s31, %s38
      %p304 = scmp.eq.s32.totalorder %s303, 0
      %s306 = sadd.s32 %s305, 1
      %s307 = scalar_select %p304, %s305, %s306
      %p310 = pneg %p304
      %p311 = scmp.eq.s32.totalorder %s23, 3
      %p312 = por %p310, %p311
      %p313 = scmp.ne.s32.totalorder %s305, %s308
      %p314 = scmp.eq.s32.totalorder %s23, 0
      %p315 = por %p313, %p314
      %p316 = scmp.ne.s32.totalorder %s305, %s308
      %p317 = scmp.eq.s32.totalorder %s28, 3
      %p318 = por %p316, %p317
      %p319 = scmp.ne.s32.totalorder %s308, %s309
      %p320 = scmp.eq.s32.totalorder %s28, 0
      %p321 = por %p319, %p320
      %p322 = scmp.ne.s32.totalorder %s308, %s309
      %p323 = scmp.eq.s32.totalorder %s29, 3
      %p324 = por %p322, %p323
      %p326 = scmp.ne.s32.totalorder %s309, %s325
      %p327 = scmp.eq.s32.totalorder %s29, 0
      %p328 = por %p326, %p327
      %s329 = ssub.s32 %s31, %s38
      %p330 = scmp.eq.s32.totalorder %s329, 0
      %s332 = sadd.s32 %s331, 1
      %s333 = scalar_select %p330, %s331, %s332
      %p336 = pneg %p330
      %p337 = scmp.eq.s32.totalorder %s23, 3
      %p338 = por %p336, %p337
      %p339 = scmp.ne.s32.totalorder %s331, %s334
      %p340 = scmp.eq.s32.totalorder %s23, 0
      %p341 = por %p339, %p340
      %p342 = scmp.ne.s32.totalorder %s331, %s334
      %p343 = scmp.eq.s32.totalorder %s28, 3
      %p344 = por %p342, %p343
      %p345 = scmp.ne.s32.totalorder %s334, %s335
      %p346 = scmp.eq.s32.totalorder %s28, 0
      %p347 = por %p345, %p346
      %p348 = scmp.ne.s32.totalorder %s334, %s335
      %p349 = scmp.eq.s32.totalorder %s29, 3
      %p350 = por %p348, %p349
      %p352 = scmp.ne.s32.totalorder %s335, %s351
      %p353 = scmp.eq.s32.totalorder %s29, 0
      %p354 = por %p352, %p353
      %s356 = sadd.s32 %s355, 1
      %p359 = scmp.eq.s32.totalorder %s23, 3
      %p360 = scmp.ne.s32.totalorder %s355, %s357
      %p361 = scmp.eq.s32.totalorder %s23, 0
      %p362 = por %p360, %p361
      %p363 = scmp.ne.s32.totalorder %s355, %s357
      %p364 = scmp.eq.s32.totalorder %s28, 3
      %p365 = por %p363, %p364
      %p366 = scmp.ne.s32.totalorder %s357, %s358
      %p367 = scmp.eq.s32.totalorder %s28, 0
      %p368 = por %p366, %p367
      %p369 = scmp.ne.s32.totalorder %s357, %s358
      %p370 = scmp.eq.s32.totalorder %s29, 3
      %p371 = por %p369, %p370
      %p373 = scmp.ne.s32.totalorder %s358, %s372
      %p374 = scmp.eq.s32.totalorder %s29, 0
      %p375 = por %p373, %p374
      %s377 = sadd.s32 %s376, 1
      %p380 = scmp.eq.s32.totalorder %s23, 3
      %p381 = scmp.ne.s32.totalorder %s376, %s378
      %p382 = scmp.eq.s32.totalorder %s23, 0
      %p383 = por %p381, %p382
      %p384 = scmp.ne.s32.totalorder %s376, %s378
      %p385 = scmp.eq.s32.totalorder %s28, 3
      %p386 = por %p384, %p385
      %p387 = scmp.ne.s32.totalorder %s378, %s379
      %p388 = scmp.eq.s32.totalorder %s28, 0
      %p389 = por %p387, %p388
      %p390 = scmp.ne.s32.totalorder %s378, %s379
      %p391 = scmp.eq.s32.totalorder %s29, 3
      %p392 = por %p390, %p391
      %p394 = scmp.ne.s32.totalorder %s379, %s393
      %p395 = scmp.eq.s32.totalorder %s29, 0
      %p396 = por %p394, %p395
      %s397 = ssub.s32 %s30, %s42
      %p398 = scmp.eq.s32.totalorder %s397, 0
      %s400 = sadd.s32 %s399, 1
      %s401 = scalar_select %p398, %s399, %s400
      %p404 = pneg %p398
      %p405 = scmp.eq.s32.totalorder %s23, 3
      %p406 = por %p404, %p405
      %p407 = scmp.ne.s32.totalorder %s399, %s402
      %p408 = scmp.eq.s32.totalorder %s23, 0
      %p409 = por %p407, %p408
      %p410 = scmp.ne.s32.totalorder %s399, %s402
      %p411 = scmp.eq.s32.totalorder %s28, 3
      %p412 = por %p410, %p411
      %p413 = scmp.ne.s32.totalorder %s402, %s403
      %p414 = scmp.eq.s32.totalorder %s28, 0
      %p415 = por %p413, %p414
      %p416 = scmp.ne.s32.totalorder %s402, %s403
      %p417 = scmp.eq.s32.totalorder %s29, 3
      %p418 = por %p416, %p417
      %p420 = scmp.ne.s32.totalorder %s403, %s419
      %p421 = scmp.eq.s32.totalorder %s29, 0
      %p422 = por %p420, %p421
      %p423 = scmp.le.s32.totalorder 1, %s23
      %p424 = scmp.lt.s32.totalorder %s23, 5
      %p425 = pnand %p423, %p424
      %p426 = pneg %p425
      // Predicated region
      $region9: #{tpu_custom_call.1} parent=5 // pred_check
        _
      $region10: #{tpu_custom_call.1} parent=5 // pred_check_branch
        %428 = sbr.rel (%p425) target = $region12
      $region11: #{tpu_custom_call.1} parent=5 // pred_region
        %s429 = ssub.s32 %s23, 1
        // Predicated region
        $region13: #{tpu_custom_call.1} parent=11 // pred_check
          %p430 = pneg %p368
        $region14: #{tpu_custom_call.1} parent=11 // pred_check_branch
          %432 = sbr.rel (%p430) target = $region16
        $region15: #{tpu_custom_call.1} parent=11 // pred_region
          _
        $region16: #{tpu_custom_call.1} parent=11 // pred_fallthru
          _
        // Predicated region
        $region17: #{tpu_custom_call.1} parent=11 // pred_check
          %p433 = pneg %p389
        $region18: #{tpu_custom_call.1} parent=11 // pred_check_branch
          %435 = sbr.rel (%p433) target = $region20
        $region19: #{tpu_custom_call.1} parent=11 // pred_region
          _
        $region20: #{tpu_custom_call.1} parent=11 // pred_fallthru
          _
      $region12: #{tpu_custom_call.1} parent=5 // pred_fallthru
        _
      %p436 = scmp.lt.s32.totalorder %s23, 4
      // Predicated region
      $region21: #{tpu_custom_call.1} parent=5 // pred_check
        %p437 = pneg %p436
      $region22: #{tpu_custom_call.1} parent=5 // pred_check_branch
        %439 = sbr.rel (%p437) target = $region24
      $region23: #{tpu_custom_call.1} parent=5 // pred_region
        // Predicated region
        $region25: #{tpu_custom_call.1} parent=23 // pred_check
          %p440 = pneg %p55
        $region26: #{tpu_custom_call.1} parent=23 // pred_check_branch
          %442 = sbr.rel (%p440) target = $region28
        $region27: #{tpu_custom_call.1} parent=23 // pred_region
          %p443 = scmp.lt.s32.totalorder %s30, 1
          %s444 = scalar_select %p443, %s30, 1
          %s445 = smul.addr %s444, 8
          %s446 = scalar_lea.vmem %s0, %s445
        $region28: #{tpu_custom_call.1} parent=23 // pred_fallthru
          _
        // Predicated region
        $region29: #{tpu_custom_call.1} parent=23 // pred_check
          %p447 = pneg %p81
        $region30: #{tpu_custom_call.1} parent=23 // pred_check_branch
          %449 = sbr.rel (%p447) target = $region32
        $region31: #{tpu_custom_call.1} parent=23 // pred_region
          %p450 = scmp.lt.s32.totalorder %s31, 1
          %s451 = scalar_select %p450, %s31, 1
          %s452 = scalar_lea.vmem %s1, %s451
        $region32: #{tpu_custom_call.1} parent=23 // pred_fallthru
          _
        // Predicated region
        $region33: #{tpu_custom_call.1} parent=23 // pred_check
          %p453 = pneg %p107
        $region34: #{tpu_custom_call.1} parent=23 // pred_check_branch
          %455 = sbr.rel (%p453) target = $region36
        $region35: #{tpu_custom_call.1} parent=23 // pred_region
          %p456 = scmp.lt.s32.totalorder %s31, 1
          %s457 = scalar_select %p456, %s31, 1
          %s458 = scalar_lea.vmem %s2, %s457
        $region36: #{tpu_custom_call.1} parent=23 // pred_fallthru
          _
        // Predicated region
        $region37: #{tpu_custom_call.1} parent=23 // pred_check
          %p459 = pneg %p133
        $region38: #{tpu_custom_call.1} parent=23 // pred_check_branch
          %461 = sbr.rel (%p459) target = $region40
        $region39: #{tpu_custom_call.1} parent=23 // pred_region
          %p462 = scmp.lt.s32.totalorder %s31, 1
          %s463 = scalar_select %p462, %s31, 1
          %s464 = smul.addr %s463, 4
          %s465 = smul.addr %s464, 4
          %s466 = scalar_lea.vmem %s3, %s465
        $region40: #{tpu_custom_call.1} parent=23 // pred_fallthru
          _
        // Predicated region
        $region41: #{tpu_custom_call.1} parent=23 // pred_check
          %p467 = pneg %p159
        $region42: #{tpu_custom_call.1} parent=23 // pred_check_branch
          %469 = sbr.rel (%p467) target = $region44
        $region43: #{tpu_custom_call.1} parent=23 // pred_region
          %p470 = scmp.lt.s32.totalorder %s31, 1
          %s471 = scalar_select %p470, %s31, 1
          %s472 = smul.addr %s471, 4
          %s473 = smul.addr %s472, 4
          %s474 = scalar_lea.vmem %s4, %s473
        $region44: #{tpu_custom_call.1} parent=23 // pred_fallthru
          _
        // Predicated region
        $region45: #{tpu_custom_call.1} parent=23 // pred_check
          %p475 = pneg %p185
        $region46: #{tpu_custom_call.1} parent=23 // pred_check_branch
          %477 = sbr.rel (%p475) target = $region48
        $region47: #{tpu_custom_call.1} parent=23 // pred_region
          %p478 = scmp.lt.s32.totalorder %s31, 1
          %s479 = scalar_select %p478, %s31, 1
          %s480 = scalar_lea.vmem %s5, %s479
        $region48: #{tpu_custom_call.1} parent=23 // pred_fallthru
          _
        // Predicated region
        $region49: #{tpu_custom_call.1} parent=23 // pred_check
          %p481 = pneg %p211
        $region50: #{tpu_custom_call.1} parent=23 // pred_check_branch
          %483 = sbr.rel (%p481) target = $region52
        $region51: #{tpu_custom_call.1} parent=23 // pred_region
          %p484 = scmp.lt.s32.totalorder %s31, 1
          %s485 = scalar_select %p484, %s31, 1
          %s486 = scalar_lea.vmem %s6, %s485
        $region52: #{tpu_custom_call.1} parent=23 // pred_fallthru
          _
        // Predicated region
        $region53: #{tpu_custom_call.1} parent=23 // pred_check
          %p487 = pneg %p237
        $region54: #{tpu_custom_call.1} parent=23 // pred_check_branch
          %489 = sbr.rel (%p487) target = $region56
        $region55: #{tpu_custom_call.1} parent=23 // pred_region
          %p490 = scmp.lt.s32.totalorder %s31, 1
          %s491 = scalar_select %p490, %s31, 1
          %s492 = scalar_lea.vmem %s7, %s491
        $region56: #{tpu_custom_call.1} parent=23 // pred_fallthru
          _
        // Predicated region
        $region57: #{tpu_custom_call.1} parent=23 // pred_check
          %p493 = pneg %p263
        $region58: #{tpu_custom_call.1} parent=23 // pred_check_branch
          %495 = sbr.rel (%p493) target = $region60
        $region59: #{tpu_custom_call.1} parent=23 // pred_region
          %p496 = scmp.lt.s32.totalorder %s31, 1
          %s497 = scalar_select %p496, %s31, 1
          %s498 = smul.addr %s497, 4
          %s499 = smul.addr %s498, 4
          %s500 = scalar_lea.vmem %s8, %s499
        $region60: #{tpu_custom_call.1} parent=23 // pred_fallthru
          _
        // Predicated region
        $region61: #{tpu_custom_call.1} parent=23 // pred_check
          %p501 = pneg %p289
        $region62: #{tpu_custom_call.1} parent=23 // pred_check_branch
          %503 = sbr.rel (%p501) target = $region64
        $region63: #{tpu_custom_call.1} parent=23 // pred_region
          %p504 = scmp.lt.s32.totalorder %s31, 1
          %s505 = scalar_select %p504, %s31, 1
          %s506 = scalar_lea.vmem %s9, %s505
        $region64: #{tpu_custom_call.1} parent=23 // pred_fallthru
          _
        // Predicated region
        $region65: #{tpu_custom_call.1} parent=23 // pred_check
          %p507 = pneg %p315
        $region66: #{tpu_custom_call.1} parent=23 // pred_check_branch
          %509 = sbr.rel (%p507) target = $region68
        $region67: #{tpu_custom_call.1} parent=23 // pred_region
          %p510 = scmp.lt.s32.totalorder %s31, 1
          %s511 = scalar_select %p510, %s31, 1
          %s512 = smul.addr %s511, 16
          %s513 = smul.addr %s512, 4
          %s514 = scalar_lea.vmem %s10, %s513
        $region68: #{tpu_custom_call.1} parent=23 // pred_fallthru
          _
        // Predicated region
        $region69: #{tpu_custom_call.1} parent=23 // pred_check
          %p515 = pneg %p341
        $region70: #{tpu_custom_call.1} parent=23 // pred_check_branch
          %517 = sbr.rel (%p515) target = $region72
        $region71: #{tpu_custom_call.1} parent=23 // pred_region
          %p518 = scmp.lt.s32.totalorder %s31, 1
          %s519 = scalar_select %p518, %s31, 1
          %s520 = scalar_lea.vmem %s11, %s519
        $region72: #{tpu_custom_call.1} parent=23 // pred_fallthru
          _
      $region24: #{tpu_custom_call.1} parent=5 // pred_fallthru
        _
      %p521 = scmp.le.s32.totalorder 1, %s23
      %p522 = scmp.lt.s32.totalorder %s23, 5
      %p523 = pnand %p521, %p522
      %p524 = pneg %p523
      // Predicated region
      $region73: #{tpu_custom_call.1} parent=5 // pred_check
        _
      $region74: #{tpu_custom_call.1} parent=5 // pred_check_branch
        %526 = sbr.rel (%p523) target = $region76
      $region75: #{tpu_custom_call.1} parent=5 // pred_region
        %s527 = ssub.s32 %s23, 1
        %p528 = scmp.lt.s32.totalorder %s32, 1
        %s529 = scalar_select %p528, %s32, 1
        %s530 = smul.addr %s529, 8
        %s531 = scalar_lea.vmem %s0, %s530
        %p532 = pneg %p61
        %p533 = pneg %p58
        %p534 = scmp.lt.s32.totalorder %s33, 1
        %s535 = scalar_select %p534, %s33, 1
        %s536 = scalar_lea.vmem %s1, %s535
        %p537 = pneg %p87
        %p538 = pneg %p84
        %p539 = scmp.lt.s32.totalorder %s33, 1
        %s540 = scalar_select %p539, %s33, 1
        %s541 = scalar_lea.vmem %s2, %s540
        %p542 = pneg %p113
        %p543 = pneg %p110
        %p544 = scmp.lt.s32.totalorder %s33, 1
        %s545 = scalar_select %p544, %s33, 1
        %s546 = smul.addr %s545, 4
        %s547 = smul.addr %s546, 4
        %s548 = scalar_lea.vmem %s3, %s547
        %p549 = pneg %p139
        %p550 = pneg %p136
        %p551 = scmp.lt.s32.totalorder %s33, 1
        %s552 = scalar_select %p551, %s33, 1
        %s553 = smul.addr %s552, 4
        %s554 = smul.addr %s553, 4
        %s555 = scalar_lea.vmem %s4, %s554
        %p556 = pneg %p165
        %p557 = pneg %p162
        %p558 = scmp.lt.s32.totalorder %s33, 1
        %s559 = scalar_select %p558, %s33, 1
        %s560 = scalar_lea.vmem %s5, %s559
        %p561 = pneg %p191
        %p562 = pneg %p188
        %p563 = scmp.lt.s32.totalorder %s33, 1
        %s564 = scalar_select %p563, %s33, 1
        %s565 = scalar_lea.vmem %s6, %s564
        %p566 = pneg %p217
        %p567 = pneg %p214
        %p568 = scmp.lt.s32.totalorder %s33, 1
        %s569 = scalar_select %p568, %s33, 1
        %s570 = scalar_lea.vmem %s7, %s569
        %p571 = pneg %p243
        %p572 = pneg %p240
        %p573 = scmp.lt.s32.totalorder %s33, 1
        %s574 = scalar_select %p573, %s33, 1
        %s575 = smul.addr %s574, 4
        %s576 = smul.addr %s575, 4
        %s577 = scalar_lea.vmem %s8, %s576
        %p578 = pneg %p269
        %p579 = pneg %p266
        %p580 = scmp.lt.s32.totalorder %s33, 1
        %s581 = scalar_select %p580, %s33, 1
        %s582 = scalar_lea.vmem %s9, %s581
        %p583 = pneg %p295
        %p584 = pneg %p292
        %p585 = scmp.lt.s32.totalorder %s33, 1
        %s586 = scalar_select %p585, %s33, 1
        %s587 = smul.addr %s586, 16
        %s588 = smul.addr %s587, 4
        %s589 = scalar_lea.vmem %s10, %s588
        %p590 = pneg %p321
        %p591 = pneg %p318
        %p592 = scmp.lt.s32.totalorder %s33, 1
        %s593 = scalar_select %p592, %s33, 1
        %s594 = scalar_lea.vmem %s11, %s593
        %p595 = pneg %p347
        %p596 = pneg %p344
        %p597 = pneg %p368
        %p598 = pneg %p365
        %p599 = pneg %p389
        %p600 = pneg %p386
        %p601 = pneg %p415
        %p602 = pneg %p412
        %s603 = sand.u32 %s402, 1
        %s604 = scalar_lea.sflag [#allocation4], %s603
        %s605 = sand.u32 %s402, 1
        %s606 = smul.addr %s605, 8
        %s607 = scalar_lea.vmem [#allocation3], %s606
        %p608 = scmp.lt.s32.totalorder %s32, 1
        %s609 = scalar_select %p608, %s32, 1
        %s610 = smul.addr %s609, 8
        %s611 = scalar_lea.vmem %s0, %s610
        %p612 = scmp.lt.s32.totalorder %s33, 1
        %s613 = scalar_select %p612, %s33, 1
        %s614 = scalar_lea.vmem %s1, %s613
        %p615 = scmp.lt.s32.totalorder %s33, 1
        %s616 = scalar_select %p615, %s33, 1
        %s617 = scalar_lea.vmem %s2, %s616
        %p618 = scmp.lt.s32.totalorder %s33, 1
        %s619 = scalar_select %p618, %s33, 1
        %s620 = smul.addr %s619, 4
        %s621 = smul.addr %s620, 4
        %s622 = scalar_lea.vmem %s3, %s621
        %p623 = scmp.lt.s32.totalorder %s33, 1
        %s624 = scalar_select %p623, %s33, 1
        %s625 = smul.addr %s624, 4
        %s626 = smul.addr %s625, 4
        %s627 = scalar_lea.vmem %s4, %s626
        %p628 = scmp.lt.s32.totalorder %s33, 1
        %s629 = scalar_select %p628, %s33, 1
        %s630 = scalar_lea.vmem %s5, %s629
        %p631 = scmp.lt.s32.totalorder %s33, 1
        %s632 = scalar_select %p631, %s33, 1
        %s633 = scalar_lea.vmem %s6, %s632
        %p634 = scmp.lt.s32.totalorder %s33, 1
        %s635 = scalar_select %p634, %s33, 1
        %s636 = scalar_lea.vmem %s7, %s635
        %p637 = scmp.lt.s32.totalorder %s33, 1
        %s638 = scalar_select %p637, %s33, 1
        %s639 = smul.addr %s638, 4
        %s640 = smul.addr %s639, 4
        %s641 = scalar_lea.vmem %s8, %s640
        %p642 = scmp.lt.s32.totalorder %s33, 1
        %s643 = scalar_select %p642, %s33, 1
        %s644 = scalar_lea.vmem %s9, %s643
        %p645 = scmp.lt.s32.totalorder %s33, 1
        %s646 = scalar_select %p645, %s33, 1
        %s647 = smul.addr %s646, 16
        %s648 = smul.addr %s647, 4
        %s649 = scalar_lea.vmem %s10, %s648
        %p650 = scmp.lt.s32.totalorder %s33, 1
        %s651 = scalar_select %p650, %s33, 1
        %s652 = scalar_lea.vmem %s11, %s651
        %p654 = scmp.eq.s32.totalorder %s33, 0
        // Predicated region
        $region77: #{tpu_custom_call.1} parent=75 // pred_check
          %p655 = pneg %p654
        $region78: #{tpu_custom_call.1} parent=75 // pred_check_branch
          %657 = sbr.rel (%p655) target = $region80
        $region79: #{tpu_custom_call.1} parent=75 // pred_region
          %v658 = vld [vmem:[%s611] sm:$0xff]
          %vm659 = vcmask 261120
          %660 = vst.msk [vmem:[#allocation2] sm:$0xff] %vm659, %v658
        $region80: #{tpu_custom_call.1} parent=75 // pred_fallthru
          _
        %v661 = vld [vmem:[#allocation2] sm:$0xff]
        %v662 = vld [vmem:[%s614] sm:$0x1]
        %v663 = vld [vmem:[%s617] sm:$0x1]
        %vm664 = vcmask 261120
        %v665 = vsel %vm664, %v661, 0.0
        %666 = vadd.xlane.f32.xlu0 %v665
        %v667 = vpop.xlane.xlu0 %666
        %v668 = vrcp.pop 32.0
        %v669 = vmul.f32 %v667, %v668
        %v670 = vsub.f32 %v661, %v669
        %v671 = vmul.f32 %v670, %v670
        %v672 = vsel %vm664, %v671, 0.0
        %673 = vadd.xlane.f32.xlu0 %v672
        %v674 = vpop.xlane.xlu0 %673
        %v675 = vmul.f32 %v674, %v668
        %v676 = vadd.f32 %v675, 1e-05
        %v677 = vrsqrt.pop %v676
        %v678 = vmul.f32 %v670, %v677
        %v680 = vlaneseq
        %v681 = vshrl.u32 %v680, 7
        %v682 = vsub.s32 0, %v681
        %v683 = vrot.slane %v662, %v682
        %v685 = vmul.f32 %v678, %v683
        %v687 = vlaneseq
        %v688 = vshrl.u32 %v687, 7
        %v689 = vsub.s32 0, %v688
        %v690 = vrot.slane %v663, %v689
        %v692 = vadd.f32 %v685, %v690
        %v693 = vpack.c.bf16 %v692, %v692
        %v694 = vld [vmem:[%s622] sm:$0xf]
        %v695 = vld [vmem:[%s622 + $0x4] sm:$0xf]
        %v696 = vld [vmem:[%s622 + $0x8] sm:$0xf]
        %v697 = vld [vmem:[%s622 + $0xc] sm:$0xf]
        %v702 = vunpack.c.l.b16 %v694
        %v703 = vunpack.c.l.b16 %v695
        %v704 = vunpack.c.l.b16 %v696
        %v705 = vunpack.c.l.b16 %v697
        %v706 = vpack.c.b16 %v703, %v702
        %v707 = vpack.c.b16 %v705, %v704
        %v711 = vsel %vm664, %v693, 0
        %713 = vmatprep.subr.bf16.mxu0 0
        %714 = vmatpush1.bf16.msra.mxu0 0
        %715 = vmatprep.subr.bf16.mxu0 0
        %716 = vmatpush1.bf16.msra.mxu0 0
        %717 = vmatprep.subr.bf16.mxu0 0
        %718 = vmatpush1.bf16.msra.mxu0 0
        %719 = vmatprep.subr.bf16.mxu0 0
        %720 = vmatpush1.bf16.msra.mxu0 0
        %721 = vmatprep.subr.bf16.mxu0 0
        %722 = vmatpush1.bf16.msra.mxu0 0
        %723 = vmatprep.subr.bf16.mxu0 0
        %724 = vmatpush1.bf16.msra.mxu0 0
        %725 = vmatprep.subr.bf16.mxu0 0
        %726 = vmatpush1.bf16.msra.mxu0 %v707
        %727 = vmatprep.subr.bf16.mxu0 0
        %728 = vmatpush1.bf16.msra.mxu0 %v706
        %729 = vmatprep.subr.bf16.mxu0 0
        %730 = vmatpush2.bf16.msra.mxu0 0
        %731 = vmatprep.subr.bf16.mxu0 0
        %732 = vmatpush2.bf16.msra.mxu0 0
        %733 = vmatprep.subr.bf16.mxu0 0
        %734 = vmatpush2.bf16.msra.mxu0 0
        %735 = vmatprep.subr.bf16.mxu0 0
        %736 = vmatpush2.bf16.msra.mxu0 0
        %737 = vmatprep.subr.bf16.mxu0 0
        %738 = vmatpush2.bf16.msra.mxu0 0
        %739 = vmatprep.subr.bf16.mxu0 0
        %740 = vmatpush2.bf16.msra.mxu0 0
        %741 = vmatprep.subr.bf16.mxu0 0
        %742 = vmatpush2.bf16.msra.mxu0 0
        %743 = vmatprep.subr.bf16.mxu0 0
        %744 = vmatpush2.bf16.msra.mxu0 0
        %745 = vmatprep.mubr.bf16.mxu0 0
        %746 = vmatmul.mubr.bf16.gmra.mxu0 %v711
        %v747 = vpop.f32.mrf.mxu0
        %v748 = vadd.f32 0.0, %v747
        %v749 = vpop.f32.mrf.mxu0
        %v750 = vpop.f32.mrf.mxu0
        %v751 = vpop.f32.mrf.mxu0
        %752 = vdwg.mxu0
        %v753 = vmul.f32 %v748, 0.17677669
        %755 = vrot.lane.b32.xlu0 %v753, 120
        %v756 = vpop.permute.xlu0 %755
        %758 = vrot.lane.b32.xlu0 %v753, 112
        %v759 = vpop.permute.xlu0 %758
        %761 = vrot.lane.b32.xlu0 %v753, 104
        %v762 = vpop.permute.xlu0 %761
        %v764 = vcombine.low %v753, %v759
        %v765 = vcombine.high %v753, %v759
        %v767 = vunpack.c.l.s4 1983009808
        %v768 = vunpack.c.0.s8 %v767
        %v769 = vlaneseq
        %v770 = vshrl.u32 %v769, 7
        %v771 = vsub.s32 %v768, %v770
        %v772 = vrot.slane %v764, %v771
        %v774 = vunpack.c.l.s4 1983009808
        %v775 = vunpack.c.0.s8 %v774
        %v776 = vlaneseq
        %v777 = vshrl.u32 %v776, 7
        %v778 = vsub.s32 %v775, %v777
        %v779 = vrot.slane %v765, %v778
        %v780 = vcombine.low %v756, %v762
        %v781 = vcombine.high %v756, %v762
        %v783 = vunpack.c.l.s4 1983009808
        %v784 = vunpack.c.0.s8 %v783
        %v785 = vlaneseq
        %v786 = vshrl.u32 %v785, 7
        %v787 = vsub.s32 %v784, %v786
        %v788 = vrot.slane %v780, %v787
        %v790 = vunpack.c.l.s4 1983009808
        %v791 = vunpack.c.0.s8 %v790
        %v792 = vlaneseq
        %v793 = vshrl.u32 %v792, 7
        %v794 = vsub.s32 %v791, %v793
        %v795 = vrot.slane %v781, %v794
        %v796 = vcombine.low %v772, %v788
        %v797 = vcombine.high %v772, %v788
        %v799 = vunpack.c.l.s4 1934713408
        %v800 = vunpack.c.0.s8 %v799
        %v801 = vlaneseq
        %v802 = vshrl.u32 %v801, 7
        %v803 = vsub.s32 %v800, %v802
        %v804 = vrot.slane %v796, %v803
        %v806 = vunpack.c.l.s4 1934713408
        %v807 = vunpack.c.0.s8 %v806
        %v808 = vlaneseq
        %v809 = vshrl.u32 %v808, 7
        %v810 = vsub.s32 %v807, %v809
        %v811 = vrot.slane %v797, %v810
        %v812 = vcombine.low %v779, %v795
        %v813 = vcombine.high %v779, %v795
        %v815 = vunpack.c.l.s4 1934713408
        %v816 = vunpack.c.0.s8 %v815
        %v817 = vlaneseq
        %v818 = vshrl.u32 %v817, 7
        %v819 = vsub.s32 %v816, %v818
        %v820 = vrot.slane %v812, %v819
        %v822 = vunpack.c.l.s4 1934713408
        %v823 = vunpack.c.0.s8 %v822
        %v824 = vlaneseq
        %v825 = vshrl.u32 %v824, 7
        %v826 = vsub.s32 %v823, %v825
        %v827 = vrot.slane %v813, %v826
        %v828 = vcombine.high %v804, 0.0
        %v829 = vcombine.high %v811, 0.0
        %v830 = vcombine.high %v820, 0.0
        %v831 = vcombine.high %v827, 0.0
        %v832 = vcombine.low %v804, %v811
        %v834 = vunpack.c.l.s4 1983009808
        %v835 = vunpack.c.0.s8 %v834
        %v836 = vlaneseq
        %v837 = vshrl.u32 %v836, 7
        %v838 = vsub.s32 %v835, %v837
        %v839 = vrot.slane %v832, %v838
        %v840 = vcombine.low %v828, %v829
        %v842 = vunpack.c.l.s4 1983009808
        %v843 = vunpack.c.0.s8 %v842
        %v844 = vlaneseq
        %v845 = vshrl.u32 %v844, 7
        %v846 = vsub.s32 %v843, %v845
        %v847 = vrot.slane %v840, %v846
        %v848 = vcombine.low %v820, %v827
        %v850 = vunpack.c.l.s4 1983009808
        %v851 = vunpack.c.0.s8 %v850
        %v852 = vlaneseq
        %v853 = vshrl.u32 %v852, 7
        %v854 = vsub.s32 %v851, %v853
        %v855 = vrot.slane %v848, %v854
        %v856 = vcombine.low %v830, %v831
        %v858 = vunpack.c.l.s4 1983009808
        %v859 = vunpack.c.0.s8 %v858
        %v860 = vlaneseq
        %v861 = vshrl.u32 %v860, 7
        %v862 = vsub.s32 %v859, %v861
        %v863 = vrot.slane %v856, %v862
        %v864 = vcombine.low %v839, %v847
        %v865 = vcombine.high %v839, %v847
        %v867 = vunpack.c.l.s4 1934713408
        %v868 = vunpack.c.0.s8 %v867
        %v869 = vlaneseq
        %v870 = vshrl.u32 %v869, 7
        %v871 = vsub.s32 %v868, %v870
        %v872 = vrot.slane %v864, %v871
        %v874 = vunpack.c.l.s4 1934713408
        %v875 = vunpack.c.0.s8 %v874
        %v876 = vlaneseq
        %v877 = vshrl.u32 %v876, 7
        %v878 = vsub.s32 %v875, %v877
        %v879 = vrot.slane %v865, %v878
        %v880 = vcombine.low %v855, %v863
        %v881 = vcombine.high %v855, %v863
        %v883 = vunpack.c.l.s4 1934713408
        %v884 = vunpack.c.0.s8 %v883
        %v885 = vlaneseq
        %v886 = vshrl.u32 %v885, 7
        %v887 = vsub.s32 %v884, %v886
        %v888 = vrot.slane %v880, %v887
        %v890 = vunpack.c.l.s4 1934713408
        %v891 = vunpack.c.0.s8 %v890
        %v892 = vlaneseq
        %v893 = vshrl.u32 %v892, 7
        %v894 = vsub.s32 %v891, %v893
        %v895 = vrot.slane %v881, %v894
        %v896 = vcombine.low %v872, %v888
        %v897 = vcombine.high %v872, %v888
        %v898 = vcombine.low %v879, %v895
        %v899 = vcombine.high %v879, %v895
        %901 = vrot.lane.b32.xlu0 %v748, 120
        %v902 = vpop.permute.xlu0 %901
        %903 = vrot.lane.b32.xlu0 %v748, 112
        %v904 = vpop.permute.xlu0 %903
        %905 = vrot.lane.b32.xlu0 %v748, 104
        %v906 = vpop.permute.xlu0 %905
        %907 = vrot.lane.b32.xlu0 %v748, 96
        %v908 = vpop.permute.xlu0 %907
        %909 = vrot.lane.b32.xlu0 %v902, 96
        %v910 = vpop.permute.xlu0 %909
        %911 = vrot.lane.b32.xlu0 %v904, 96
        %v912 = vpop.permute.xlu0 %911
        %913 = vrot.lane.b32.xlu0 %v906, 96
        %v914 = vpop.permute.xlu0 %913
        %v919 = vcombine.low %v908, %v912
        %v920 = vcombine.high %v908, %v912
        %v922 = vunpack.c.l.s4 1983009808
        %v923 = vunpack.c.0.s8 %v922
        %v924 = vlaneseq
        %v925 = vshrl.u32 %v924, 7
        %v926 = vsub.s32 %v923, %v925
        %v927 = vrot.slane %v919, %v926
        %v929 = vunpack.c.l.s4 1983009808
        %v930 = vunpack.c.0.s8 %v929
        %v931 = vlaneseq
        %v932 = vshrl.u32 %v931, 7
        %v933 = vsub.s32 %v930, %v932
        %v934 = vrot.slane %v920, %v933
        %v935 = vcombine.low %v910, %v914
        %v936 = vcombine.high %v910, %v914
        %v938 = vunpack.c.l.s4 1983009808
        %v939 = vunpack.c.0.s8 %v938
        %v940 = vlaneseq
        %v941 = vshrl.u32 %v940, 7
        %v942 = vsub.s32 %v939, %v941
        %v943 = vrot.slane %v935, %v942
        %v945 = vunpack.c.l.s4 1983009808
        %v946 = vunpack.c.0.s8 %v945
        %v947 = vlaneseq
        %v948 = vshrl.u32 %v947, 7
        %v949 = vsub.s32 %v946, %v948
        %v950 = vrot.slane %v936, %v949
        %v951 = vcombine.low %v927, %v943
        %v952 = vcombine.high %v927, %v943
        %v954 = vunpack.c.l.s4 1934713408
        %v955 = vunpack.c.0.s8 %v954
        %v956 = vlaneseq
        %v957 = vshrl.u32 %v956, 7
        %v958 = vsub.s32 %v955, %v957
        %v959 = vrot.slane %v951, %v958
        %v961 = vunpack.c.l.s4 1934713408
        %v962 = vunpack.c.0.s8 %v961
        %v963 = vlaneseq
        %v964 = vshrl.u32 %v963, 7
        %v965 = vsub.s32 %v962, %v964
        %v966 = vrot.slane %v952, %v965
        %v967 = vcombine.low %v934, %v950
        %v968 = vcombine.high %v934, %v950
        %v970 = vunpack.c.l.s4 1934713408
        %v971 = vunpack.c.0.s8 %v970
        %v972 = vlaneseq
        %v973 = vshrl.u32 %v972, 7
        %v974 = vsub.s32 %v971, %v973
        %v975 = vrot.slane %v967, %v974
        %v977 = vunpack.c.l.s4 1934713408
        %v978 = vunpack.c.0.s8 %v977
        %v979 = vlaneseq
        %v980 = vshrl.u32 %v979, 7
        %v981 = vsub.s32 %v978, %v980
        %v982 = vrot.slane %v968, %v981
        %v983 = vcombine.high %v959, 0.0
        %v984 = vcombine.high %v966, 0.0
        %v985 = vcombine.high %v975, 0.0
        %v986 = vcombine.high %v982, 0.0
        %v987 = vcombine.low %v959, %v966
        %v989 = vunpack.c.l.s4 1983009808
        %v990 = vunpack.c.0.s8 %v989
        %v991 = vlaneseq
        %v992 = vshrl.u32 %v991, 7
        %v993 = vsub.s32 %v990, %v992
        %v994 = vrot.slane %v987, %v993
        %v995 = vcombine.low %v983, %v984
        %v997 = vunpack.c.l.s4 1983009808
        %v998 = vunpack.c.0.s8 %v997
        %v999 = vlaneseq
        %v1000 = vshrl.u32 %v999, 7
        %v1001 = vsub.s32 %v998, %v1000
        %v1002 = vrot.slane %v995, %v1001
        %v1003 = vcombine.low %v975, %v982
        %v1005 = vunpack.c.l.s4 1983009808
        %v1006 = vunpack.c.0.s8 %v1005
        %v1007 = vlaneseq
        %v1008 = vshrl.u32 %v1007, 7
        %v1009 = vsub.s32 %v1006, %v1008
        %v1010 = vrot.slane %v1003, %v1009
        %v1011 = vcombine.low %v985, %v986
        %v1013 = vunpack.c.l.s4 1983009808
        %v1014 = vunpack.c.0.s8 %v1013
        %v1015 = vlaneseq
        %v1016 = vshrl.u32 %v1015, 7
        %v1017 = vsub.s32 %v1014, %v1016
        %v1018 = vrot.slane %v1011, %v1017
        %v1019 = vcombine.low %v994, %v1002
        %v1020 = vcombine.high %v994, %v1002
        %v1022 = vunpack.c.l.s4 1934713408
        %v1023 = vunpack.c.0.s8 %v1022
        %v1024 = vlaneseq
        %v1025 = vshrl.u32 %v1024, 7
        %v1026 = vsub.s32 %v1023, %v1025
        %v1027 = vrot.slane %v1019, %v1026
        %v1029 = vunpack.c.l.s4 1934713408
        %v1030 = vunpack.c.0.s8 %v1029
        %v1031 = vlaneseq
        %v1032 = vshrl.u32 %v1031, 7
        %v1033 = vsub.s32 %v1030, %v1032
        %v1034 = vrot.slane %v1020, %v1033
        %v1035 = vcombine.low %v1010, %v1018
        %v1036 = vcombine.high %v1010, %v1018
        %v1038 = vunpack.c.l.s4 1934713408
        %v1039 = vunpack.c.0.s8 %v1038
        %v1040 = vlaneseq
        %v1041 = vshrl.u32 %v1040, 7
        %v1042 = vsub.s32 %v1039, %v1041
        %v1043 = vrot.slane %v1035, %v1042
        %v1045 = vunpack.c.l.s4 1934713408
        %v1046 = vunpack.c.0.s8 %v1045
        %v1047 = vlaneseq
        %v1048 = vshrl.u32 %v1047, 7
        %v1049 = vsub.s32 %v1046, %v1048
        %v1050 = vrot.slane %v1036, %v1049
        %v1051 = vcombine.low %v1027, %v1043
        %v1052 = vcombine.high %v1027, %v1043
        %v1053 = vcombine.low %v1034, %v1050
        %v1054 = vcombine.high %v1034, %v1050
        %1055 = vrot.lane.b32.xlu0 %v748, 64
        %v1056 = vpop.permute.xlu0 %1055
        %1057 = vrot.lane.b32.xlu0 %v902, 64
        %v1058 = vpop.permute.xlu0 %1057
        %1059 = vrot.lane.b32.xlu0 %v904, 64
        %v1060 = vpop.permute.xlu0 %1059
        %1061 = vrot.lane.b32.xlu0 %v906, 64
        %v1062 = vpop.permute.xlu0 %1061
        %v1067 = vcombine.low %v1056, %v1060
        %v1068 = vcombine.high %v1056, %v1060
        %v1070 = vunpack.c.l.s4 1983009808
        %v1071 = vunpack.c.0.s8 %v1070
        %v1072 = vlaneseq
        %v1073 = vshrl.u32 %v1072, 7
        %v1074 = vsub.s32 %v1071, %v1073
        %v1075 = vrot.slane %v1067, %v1074
        %v1077 = vunpack.c.l.s4 1983009808
        %v1078 = vunpack.c.0.s8 %v1077
        %v1079 = vlaneseq
        %v1080 = vshrl.u32 %v1079, 7
        %v1081 = vsub.s32 %v1078, %v1080
        %v1082 = vrot.slane %v1068, %v1081
        %v1083 = vcombine.low %v1058, %v1062
        %v1084 = vcombine.high %v1058, %v1062
        %v1086 = vunpack.c.l.s4 1983009808
        %v1087 = vunpack.c.0.s8 %v1086
        %v1088 = vlaneseq
        %v1089 = vshrl.u32 %v1088, 7
        %v1090 = vsub.s32 %v1087, %v1089
        %v1091 = vrot.slane %v1083, %v1090
        %v1093 = vunpack.c.l.s4 1983009808
        %v1094 = vunpack.c.0.s8 %v1093
        %v1095 = vlaneseq
        %v1096 = vshrl.u32 %v1095, 7
        %v1097 = vsub.s32 %v1094, %v1096
        %v1098 = vrot.slane %v1084, %v1097
        %v1099 = vcombine.low %v1075, %v1091
        %v1100 = vcombine.high %v1075, %v1091
        %v1102 = vunpack.c.l.s4 1934713408
        %v1103 = vunpack.c.0.s8 %v1102
        %v1104 = vlaneseq
        %v1105 = vshrl.u32 %v1104, 7
        %v1106 = vsub.s32 %v1103, %v1105
        %v1107 = vrot.slane %v1099, %v1106
        %v1109 = vunpack.c.l.s4 1934713408
        %v1110 = vunpack.c.0.s8 %v1109
        %v1111 = vlaneseq
        %v1112 = vshrl.u32 %v1111, 7
        %v1113 = vsub.s32 %v1110, %v1112
        %v1114 = vrot.slane %v1100, %v1113
        %v1115 = vcombine.low %v1082, %v1098
        %v1116 = vcombine.high %v1082, %v1098
        %v1118 = vunpack.c.l.s4 1934713408
        %v1119 = vunpack.c.0.s8 %v1118
        %v1120 = vlaneseq
        %v1121 = vshrl.u32 %v1120, 7
        %v1122 = vsub.s32 %v1119, %v1121
        %v1123 = vrot.slane %v1115, %v1122
        %v1125 = vunpack.c.l.s4 1934713408
        %v1126 = vunpack.c.0.s8 %v1125
        %v1127 = vlaneseq
        %v1128 = vshrl.u32 %v1127, 7
        %v1129 = vsub.s32 %v1126, %v1128
        %v1130 = vrot.slane %v1116, %v1129
        %v1131 = vcombine.high %v1107, 0.0
        %v1132 = vcombine.high %v1114, 0.0
        %v1133 = vcombine.high %v1123, 0.0
        %v1134 = vcombine.high %v1130, 0.0
        %v1135 = vcombine.low %v1107, %v1114
        %v1137 = vunpack.c.l.s4 1983009808
        %v1138 = vunpack.c.0.s8 %v1137
        %v1139 = vlaneseq
        %v1140 = vshrl.u32 %v1139, 7
        %v1141 = vsub.s32 %v1138, %v1140
        %v1142 = vrot.slane %v1135, %v1141
        %v1143 = vcombine.low %v1131, %v1132
        %v1145 = vunpack.c.l.s4 1983009808
        %v1146 = vunpack.c.0.s8 %v1145
        %v1147 = vlaneseq
        %v1148 = vshrl.u32 %v1147, 7
        %v1149 = vsub.s32 %v1146, %v1148
        %v1150 = vrot.slane %v1143, %v1149
        %v1151 = vcombine.low %v1123, %v1130
        %v1153 = vunpack.c.l.s4 1983009808
        %v1154 = vunpack.c.0.s8 %v1153
        %v1155 = vlaneseq
        %v1156 = vshrl.u32 %v1155, 7
        %v1157 = vsub.s32 %v1154, %v1156
        %v1158 = vrot.slane %v1151, %v1157
        %v1159 = vcombine.low %v1133, %v1134
        %v1161 = vunpack.c.l.s4 1983009808
        %v1162 = vunpack.c.0.s8 %v1161
        %v1163 = vlaneseq
        %v1164 = vshrl.u32 %v1163, 7
        %v1165 = vsub.s32 %v1162, %v1164
        %v1166 = vrot.slane %v1159, %v1165
        %v1167 = vcombine.low %v1142, %v1150
        %v1168 = vcombine.high %v1142, %v1150
        %v1170 = vunpack.c.l.s4 1934713408
        %v1171 = vunpack.c.0.s8 %v1170
        %v1172 = vlaneseq
        %v1173 = vshrl.u32 %v1172, 7
        %v1174 = vsub.s32 %v1171, %v1173
        %v1175 = vrot.slane %v1167, %v1174
        %v1177 = vunpack.c.l.s4 1934713408
        %v1178 = vunpack.c.0.s8 %v1177
        %v1179 = vlaneseq
        %v1180 = vshrl.u32 %v1179, 7
        %v1181 = vsub.s32 %v1178, %v1180
        %v1182 = vrot.slane %v1168, %v1181
        %v1183 = vcombine.low %v1158, %v1166
        %v1184 = vcombine.high %v1158, %v1166
        %v1186 = vunpack.c.l.s4 1934713408
        %v1187 = vunpack.c.0.s8 %v1186
        %v1188 = vlaneseq
        %v1189 = vshrl.u32 %v1188, 7
        %v1190 = vsub.s32 %v1187, %v1189
        %v1191 = vrot.slane %v1183, %v1190
        %v1193 = vunpack.c.l.s4 1934713408
        %v1194 = vunpack.c.0.s8 %v1193
        %v1195 = vlaneseq
        %v1196 = vshrl.u32 %v1195, 7
        %v1197 = vsub.s32 %v1194, %v1196
        %v1198 = vrot.slane %v1184, %v1197
        %v1199 = vcombine.low %v1175, %v1191
        %v1200 = vcombine.high %v1175, %v1191
        %v1201 = vcombine.low %v1182, %v1198
        %v1202 = vcombine.high %v1182, %v1198
        %v1203 = vlaneseq
        %v1204 = vshrl.u32 %v1203, 7
        %v1205 = vlaneseq
        %v1206 = vand.u32 %v1205, 127
        %vm1207 = vcmp.ge.s32.totalorder %v1204, %v1206
        %v1208 = vpack.c.bf16 %v896, %v896
        %v1209 = vpack.c.bf16 %v897, %v897
        %v1210 = vpack.c.bf16 %v898, %v898
        %v1211 = vpack.c.bf16 %v899, %v899
        %v1212 = vpack.c.bf16 %v1051, %v1051
        %v1213 = vpack.c.bf16 %v1052, %v1052
        %v1214 = vpack.c.bf16 %v1053, %v1053
        %v1215 = vpack.c.bf16 %v1054, %v1054
        %vm1216 = vcmask 64512
        %v1218 = vsel %vm1216, %v1208, 0
        %v1221 = vsel %vm1216, %v1212, 0
        %1223 = vmatprep.subr.bf16.mxu0 0
        %1224 = vmatpush1.bf16.xpose.msra.mxu0 0
        %1225 = vmatprep.subr.bf16.mxu0 0
        %1226 = vmatpush1.bf16.xpose.msra.mxu0 0
        %1227 = vmatprep.subr.bf16.mxu0 0
        %1228 = vmatpush1.bf16.xpose.msra.mxu0 0
        %1229 = vmatprep.subr.bf16.mxu0 0
        %1230 = vmatpush1.bf16.xpose.msra.mxu0 0
        %1231 = vmatprep.subr.bf16.mxu0 0
        %1232 = vmatpush1.bf16.xpose.msra.mxu0 0
        %1233 = vmatprep.subr.bf16.mxu0 0
        %1234 = vmatpush1.bf16.xpose.msra.mxu0 0
        %1235 = vmatprep.subr.bf16.mxu0 0
        %1236 = vmatpush1.bf16.xpose.msra.mxu0 0
        %1237 = vmatprep.subr.bf16.mxu0 0
        %1238 = vmatpush1.bf16.xpose.msra.mxu0 %v1221
        %1239 = vmatprep.subr.bf16.mxu0 0
        %1240 = vmatpush2.bf16.xpose.msra.mxu0 0
        %1241 = vmatprep.subr.bf16.mxu0 0
        %1242 = vmatpush2.bf16.xpose.msra.mxu0 0
        %1243 = vmatprep.subr.bf16.mxu0 0
        %1244 = vmatpush2.bf16.xpose.msra.mxu0 0
        %1245 = vmatprep.subr.bf16.mxu0 0
        %1246 = vmatpush2.bf16.xpose.msra.mxu0 0
        %1247 = vmatprep.subr.bf16.mxu0 0
        %1248 = vmatpush2.bf16.xpose.msra.mxu0 0
        %1249 = vmatprep.subr.bf16.mxu0 0
        %1250 = vmatpush2.bf16.xpose.msra.mxu0 0
        %1251 = vmatprep.subr.bf16.mxu0 0
        %1252 = vmatpush2.bf16.xpose.msra.mxu0 0
        %1253 = vmatprep.subr.bf16.mxu0 0
        %1254 = vmatpush2.bf16.xpose.msra.mxu0 0
        %1255 = vmatprep.mubr.bf16.mxu0 0
        %1256 = vmatmul.mubr.bf16.gmra.mxu0 %v1218
        %v1257 = vpop.f32.mrf.mxu0
        %v1258 = vadd.f32 0.0, %v1257
        %v1259 = vpop.f32.mrf.mxu0
        %v1260 = vpop.f32.mrf.mxu0
        %v1261 = vpop.f32.mrf.mxu0
        %1262 = vdwg.mxu0
        %v1264 = vsel %vm1216, %v1209, 0
        %v1267 = vsel %vm1216, %v1213, 0
        %1269 = vmatprep.subr.bf16.mxu0 0
        %1270 = vmatpush1.bf16.xpose.msra.mxu0 0
        %1271 = vmatprep.subr.bf16.mxu0 0
        %1272 = vmatpush1.bf16.xpose.msra.mxu0 0
        %1273 = vmatprep.subr.bf16.mxu0 0
        %1274 = vmatpush1.bf16.xpose.msra.mxu0 0
        %1275 = vmatprep.subr.bf16.mxu0 0
        %1276 = vmatpush1.bf16.xpose.msra.mxu0 0
        %1277 = vmatprep.subr.bf16.mxu0 0
        %1278 = vmatpush1.bf16.xpose.msra.mxu0 0
        %1279 = vmatprep.subr.bf16.mxu0 0
        %1280 = vmatpush1.bf16.xpose.msra.mxu0 0
        %1281 = vmatprep.subr.bf16.mxu0 0
        %1282 = vmatpush1.bf16.xpose.msra.mxu0 0
        %1283 = vmatprep.subr.bf16.mxu0 0
        %1284 = vmatpush1.bf16.xpose.msra.mxu0 %v1267
        %1285 = vmatprep.subr.bf16.mxu0 0
        %1286 = vmatpush2.bf16.xpose.msra.mxu0 0
        %1287 = vmatprep.subr.bf16.mxu0 0
        %1288 = vmatpush2.bf16.xpose.msra.mxu0 0
        %1289 = vmatprep.subr.bf16.mxu0 0
        %1290 = vmatpush2.bf16.xpose.msra.mxu0 0
        %1291 = vmatprep.subr.bf16.mxu0 0
        %1292 = vmatpush2.bf16.xpose.msra.mxu0 0
        %1293 = vmatprep.subr.bf16.mxu0 0
        %1294 = vmatpush2.bf16.xpose.msra.mxu0 0
        %1295 = vmatprep.subr.bf16.mxu0 0
        %1296 = vmatpush2.bf16.xpose.msra.mxu0 0
        %1297 = vmatprep.subr.bf16.mxu0 0
        %1298 = vmatpush2.bf16.xpose.msra.mxu0 0
        %1299 = vmatprep.subr.bf16.mxu0 0
        %1300 = vmatpush2.bf16.xpose.msra.mxu0 0
        %1301 = vmatprep.mubr.bf16.mxu0 0
        %1302 = vmatmul.mubr.bf16.gmra.mxu0 %v1264
        %v1303 = vpop.f32.mrf.mxu0
        %v1304 = vadd.f32 0.0, %v1303
        %v1305 = vpop.f32.mrf.mxu0
        %v1306 = vpop.f32.mrf.mxu0
        %v1307 = vpop.f32.mrf.mxu0
        %1308 = vdwg.mxu0
        %v1310 = vsel %vm1216, %v1210, 0
        %v1313 = vsel %vm1216, %v1214, 0
        %1315 = vmatprep.subr.bf16.mxu0 0
        %1316 = vmatpush1.bf16.xpose.msra.mxu0 0
        %1317 = vmatprep.subr.bf16.mxu0 0
        %1318 = vmatpush1.bf16.xpose.msra.mxu0 0
        %1319 = vmatprep.subr.bf16.mxu0 0
        %1320 = vmatpush1.bf16.xpose.msra.mxu0 0
        %1321 = vmatprep.subr.bf16.mxu0 0
        %1322 = vmatpush1.bf16.xpose.msra.mxu0 0
        %1323 = vmatprep.subr.bf16.mxu0 0
        %1324 = vmatpush1.bf16.xpose.msra.mxu0 0
        %1325 = vmatprep.subr.bf16.mxu0 0
        %1326 = vmatpush1.bf16.xpose.msra.mxu0 0
        %1327 = vmatprep.subr.bf16.mxu0 0
        %1328 = vmatpush1.bf16.xpose.msra.mxu0 0
        %1329 = vmatprep.subr.bf16.mxu0 0
        %1330 = vmatpush1.bf16.xpose.msra.mxu0 %v1313
        %1331 = vmatprep.subr.bf16.mxu0 0
        %1332 = vmatpush2.bf16.xpose.msra.mxu0 0
        %1333 = vmatprep.subr.bf16.mxu0 0
        %1334 = vmatpush2.bf16.xpose.msra.mxu0 0
        %1335 = vmatprep.subr.bf16.mxu0 0
        %1336 = vmatpush2.bf16.xpose.msra.mxu0 0
        %1337 = vmatprep.subr.bf16.mxu0 0
        %1338 = vmatpush2.bf16.xpose.msra.mxu0 0
        %1339 = vmatprep.subr.bf16.mxu0 0
        %1340 = vmatpush2.bf16.xpose.msra.mxu0 0
        %1341 = vmatprep.subr.bf16.mxu0 0
        %1342 = vmatpush2.bf16.xpose.msra.mxu0 0
        %1343 = vmatprep.subr.bf16.mxu0 0
        %1344 = vmatpush2.bf16.xpose.msra.mxu0 0
        %1345 = vmatprep.subr.bf16.mxu0 0
        %1346 = vmatpush2.bf16.xpose.msra.mxu0 0
        %1347 = vmatprep.mubr.bf16.mxu0 0
        %1348 = vmatmul.mubr.bf16.gmra.mxu0 %v1310
        %v1349 = vpop.f32.mrf.mxu0
        %v1350 = vadd.f32 0.0, %v1349
        %v1351 = vpop.f32.mrf.mxu0
        %v1352 = vpop.f32.mrf.mxu0
        %v1353 = vpop.f32.mrf.mxu0
        %1354 = vdwg.mxu0
        %v1356 = vsel %vm1216, %v1211, 0
        %v1359 = vsel %vm1216, %v1215, 0
        %1361 = vmatprep.subr.bf16.mxu0 0
        %1362 = vmatpush1.bf16.xpose.msra.mxu0 0
        %1363 = vmatprep.subr.bf16.mxu0 0
        %1364 = vmatpush1.bf16.xpose.msra.mxu0 0
        %1365 = vmatprep.subr.bf16.mxu0 0
        %1366 = vmatpush1.bf16.xpose.msra.mxu0 0
        %1367 = vmatprep.subr.bf16.mxu0 0
        %1368 = vmatpush1.bf16.xpose.msra.mxu0 0
        %1369 = vmatprep.subr.bf16.mxu0 0
        %1370 = vmatpush1.bf16.xpose.msra.mxu0 0
        %1371 = vmatprep.subr.bf16.mxu0 0
        %1372 = vmatpush1.bf16.xpose.msra.mxu0 0
        %1373 = vmatprep.subr.bf16.mxu0 0
        %1374 = vmatpush1.bf16.xpose.msra.mxu0 0
        %1375 = vmatprep.subr.bf16.mxu0 0
        %1376 = vmatpush1.bf16.xpose.msra.mxu0 %v1359
        %1377 = vmatprep.subr.bf16.mxu0 0
        %1378 = vmatpush2.bf16.xpose.msra.mxu0 0
        %1379 = vmatprep.subr.bf16.mxu0 0
        %1380 = vmatpush2.bf16.xpose.msra.mxu0 0
        %1381 = vmatprep.subr.bf16.mxu0 0
        %1382 = vmatpush2.bf16.xpose.msra.mxu0 0
        %1383 = vmatprep.subr.bf16.mxu0 0
        %1384 = vmatpush2.bf16.xpose.msra.mxu0 0
        %1385 = vmatprep.subr.bf16.mxu0 0
        %1386 = vmatpush2.bf16.xpose.msra.mxu0 0
        %1387 = vmatprep.subr.bf16.mxu0 0
        %1388 = vmatpush2.bf16.xpose.msra.mxu0 0
        %1389 = vmatprep.subr.bf16.mxu0 0
        %1390 = vmatpush2.bf16.xpose.msra.mxu0 0
        %1391 = vmatprep.subr.bf16.mxu0 0
        %1392 = vmatpush2.bf16.xpose.msra.mxu0 0
        %1393 = vmatprep.mubr.bf16.mxu0 0
        %1394 = vmatmul.mubr.bf16.gmra.mxu0 %v1356
        %v1395 = vpop.f32.mrf.mxu0
        %v1396 = vadd.f32 0.0, %v1395
        %v1397 = vpop.f32.mrf.mxu0
        %v1398 = vpop.f32.mrf.mxu0
        %v1399 = vpop.f32.mrf.mxu0
        %1400 = vdwg.mxu0
        %v1401 = vsel %vm1207, 1, 0
        %vm1402 = vcmp.eq.s32.totalorder %v1401, 1
        %v1403 = vsel %vm1402, %v1258, -inf
        %v1404 = vsel %vm1402, %v1304, -inf
        %v1405 = vsel %vm1402, %v1350, -inf
        %v1406 = vsel %vm1402, %v1396, -inf
        %v1407 = vsel %vm1216, %v1403, -inf
        %1408 = vmax.xlane.f32.xlu0 %v1407
        %v1409 = vpop.xlane.xlu0 %1408
        %v1410 = vsel %vm1216, %v1404, -inf
        %1411 = vmax.xlane.f32.xlu0 %v1410
        %v1412 = vpop.xlane.xlu0 %1411
        %v1413 = vsel %vm1216, %v1405, -inf
        %1414 = vmax.xlane.f32.xlu0 %v1413
        %v1415 = vpop.xlane.xlu0 %1414
        %v1416 = vsel %vm1216, %v1406, -inf
        %1417 = vmax.xlane.f32.xlu0 %v1416
        %v1418 = vpop.xlane.xlu0 %1417
        %v1419 = vsub.f32 %v1403, %v1409
        %v1420 = vsub.f32 %v1404, %v1412
        %v1421 = vsub.f32 %v1405, %v1415
        %v1422 = vsub.f32 %v1406, %v1418
        %v1423 = vmul.f32 %v1419, 1.442695
        %v1424 = vpow.pop %v1423
        %v1425 = vmul.f32 %v1420, 1.442695
        %v1426 = vpow.pop %v1425
        %v1427 = vmul.f32 %v1421, 1.442695
        %v1428 = vpow.pop %v1427
        %v1429 = vmul.f32 %v1422, 1.442695
        %v1430 = vpow.pop %v1429
        %v1431 = vsel %vm1216, %v1424, 0.0
        %1432 = vadd.xlane.f32.xlu0 %v1431
        %v1433 = vpop.xlane.xlu0 %1432
        %v1434 = vsel %vm1216, %v1426, 0.0
        %1435 = vadd.xlane.f32.xlu0 %v1434
        %v1436 = vpop.xlane.xlu0 %1435
        %v1437 = vsel %vm1216, %v1428, 0.0
        %1438 = vadd.xlane.f32.xlu0 %v1437
        %v1439 = vpop.xlane.xlu0 %1438
        %v1440 = vsel %vm1216, %v1430, 0.0
        %1441 = vadd.xlane.f32.xlu0 %v1440
        %v1442 = vpop.xlane.xlu0 %1441
        %v1443 = vrcp.pop %v1433
        %v1444 = vrcp.pop %v1436
        %v1445 = vrcp.pop %v1439
        %v1446 = vrcp.pop %v1442
        %v1447 = vmul.f32 %v1424, %v1443
        %v1448 = vmul.f32 %v1426, %v1444
        %v1449 = vmul.f32 %v1428, %v1445
        %v1450 = vmul.f32 %v1430, %v1446
        %v1451 = vpack.c.bf16 %v1447, %v1447
        %v1452 = vpack.c.bf16 %v1448, %v1448
        %v1453 = vpack.c.bf16 %v1449, %v1449
        %v1454 = vpack.c.bf16 %v1450, %v1450
        %v1455 = vpack.c.bf16 %v1199, %v1199
        %v1456 = vpack.c.bf16 %v1200, %v1200
        %v1457 = vpack.c.bf16 %v1201, %v1201
        %v1458 = vpack.c.bf16 %v1202, %v1202
        %v1460 = vsel %vm1216, %v1451, 0
        %vm1462 = vcmask 1043456
        %v1464 = vsel %vm1462, %v1455, 0
        %1466 = vmatprep.subr.bf16.mxu0 0
        %1467 = vmatpush1.bf16.msra.mxu0 0
        %1468 = vmatprep.subr.bf16.mxu0 0
        %1469 = vmatpush1.bf16.msra.mxu0 0
        %1470 = vmatprep.subr.bf16.mxu0 0
        %1471 = vmatpush1.bf16.msra.mxu0 0
        %1472 = vmatprep.subr.bf16.mxu0 0
        %1473 = vmatpush1.bf16.msra.mxu0 0
        %1474 = vmatprep.subr.bf16.mxu0 0
        %1475 = vmatpush1.bf16.msra.mxu0 0
        %1476 = vmatprep.subr.bf16.mxu0 0
        %1477 = vmatpush1.bf16.msra.mxu0 0
        %1478 = vmatprep.subr.bf16.mxu0 0
        %1479 = vmatpush1.bf16.msra.mxu0 0
        %1480 = vmatprep.subr.bf16.mxu0 0
        %1481 = vmatpush1.bf16.msra.mxu0 %v1464
        %1482 = vmatprep.subr.bf16.mxu0 0
        %1483 = vmatpush2.bf16.msra.mxu0 0
        %1484 = vmatprep.subr.bf16.mxu0 0
        %1485 = vmatpush2.bf16.msra.mxu0 0
        %1486 = vmatprep.subr.bf16.mxu0 0
        %1487 = vmatpush2.bf16.msra.mxu0 0
        %1488 = vmatprep.subr.bf16.mxu0 0
        %1489 = vmatpush2.bf16.msra.mxu0 0
        %1490 = vmatprep.subr.bf16.mxu0 0
        %1491 = vmatpush2.bf16.msra.mxu0 0
        %1492 = vmatprep.subr.bf16.mxu0 0
        %1493 = vmatpush2.bf16.msra.mxu0 0
        %1494 = vmatprep.subr.bf16.mxu0 0
        %1495 = vmatpush2.bf16.msra.mxu0 0
        %1496 = vmatprep.subr.bf16.mxu0 0
        %1497 = vmatpush2.bf16.msra.mxu0 0
        %1498 = vmatprep.mubr.bf16.mxu0 0
        %1499 = vmatmul.mubr.bf16.gmra.mxu0 %v1460
        %v1500 = vpop.f32.mrf.mxu0
        %v1501 = vadd.f32 0.0, %v1500
        %v1502 = vpop.f32.mrf.mxu0
        %v1503 = vpop.f32.mrf.mxu0
        %v1504 = vpop.f32.mrf.mxu0
        %1505 = vdwg.mxu0
        %v1507 = vsel %vm1216, %v1452, 0
        %v1510 = vsel %vm1462, %v1456, 0
        %1512 = vmatprep.subr.bf16.mxu0 0
        %1513 = vmatpush1.bf16.msra.mxu0 0
        %1514 = vmatprep.subr.bf16.mxu0 0
        %1515 = vmatpush1.bf16.msra.mxu0 0
        %1516 = vmatprep.subr.bf16.mxu0 0
        %1517 = vmatpush1.bf16.msra.mxu0 0
        %1518 = vmatprep.subr.bf16.mxu0 0
        %1519 = vmatpush1.bf16.msra.mxu0 0
        %1520 = vmatprep.subr.bf16.mxu0 0
        %1521 = vmatpush1.bf16.msra.mxu0 0
        %1522 = vmatprep.subr.bf16.mxu0 0
        %1523 = vmatpush1.bf16.msra.mxu0 0
        %1524 = vmatprep.subr.bf16.mxu0 0
        %1525 = vmatpush1.bf16.msra.mxu0 0
        %1526 = vmatprep.subr.bf16.mxu0 0
        %1527 = vmatpush1.bf16.msra.mxu0 %v1510
        %1528 = vmatprep.subr.bf16.mxu0 0
        %1529 = vmatpush2.bf16.msra.mxu0 0
        %1530 = vmatprep.subr.bf16.mxu0 0
        %1531 = vmatpush2.bf16.msra.mxu0 0
        %1532 = vmatprep.subr.bf16.mxu0 0
        %1533 = vmatpush2.bf16.msra.mxu0 0
        %1534 = vmatprep.subr.bf16.mxu0 0
        %1535 = vmatpush2.bf16.msra.mxu0 0
        %1536 = vmatprep.subr.bf16.mxu0 0
        %1537 = vmatpush2.bf16.msra.mxu0 0
        %1538 = vmatprep.subr.bf16.mxu0 0
        %1539 = vmatpush2.bf16.msra.mxu0 0
        %1540 = vmatprep.subr.bf16.mxu0 0
        %1541 = vmatpush2.bf16.msra.mxu0 0
        %1542 = vmatprep.subr.bf16.mxu0 0
        %1543 = vmatpush2.bf16.msra.mxu0 0
        %1544 = vmatprep.mubr.bf16.mxu0 0
        %1545 = vmatmul.mubr.bf16.gmra.mxu0 %v1507
        %v1546 = vpop.f32.mrf.mxu0
        %v1547 = vadd.f32 0.0, %v1546
        %v1548 = vpop.f32.mrf.mxu0
        %v1549 = vpop.f32.mrf.mxu0
        %v1550 = vpop.f32.mrf.mxu0
        %1551 = vdwg.mxu0
        %v1553 = vsel %vm1216, %v1453, 0
        %v1556 = vsel %vm1462, %v1457, 0
        %1558 = vmatprep.subr.bf16.mxu0 0
        %1559 = vmatpush1.bf16.msra.mxu0 0
        %1560 = vmatprep.subr.bf16.mxu0 0
        %1561 = vmatpush1.bf16.msra.mxu0 0
        %1562 = vmatprep.subr.bf16.mxu0 0
        %1563 = vmatpush1.bf16.msra.mxu0 0
        %1564 = vmatprep.subr.bf16.mxu0 0
        %1565 = vmatpush1.bf16.msra.mxu0 0
        %1566 = vmatprep.subr.bf16.mxu0 0
        %1567 = vmatpush1.bf16.msra.mxu0 0
        %1568 = vmatprep.subr.bf16.mxu0 0
        %1569 = vmatpush1.bf16.msra.mxu0 0
        %1570 = vmatprep.subr.bf16.mxu0 0
        %1571 = vmatpush1.bf16.msra.mxu0 0
        %1572 = vmatprep.subr.bf16.mxu0 0
        %1573 = vmatpush1.bf16.msra.mxu0 %v1556
        %1574 = vmatprep.subr.bf16.mxu0 0
        %1575 = vmatpush2.bf16.msra.mxu0 0
        %1576 = vmatprep.subr.bf16.mxu0 0
        %1577 = vmatpush2.bf16.msra.mxu0 0
        %1578 = vmatprep.subr.bf16.mxu0 0
        %1579 = vmatpush2.bf16.msra.mxu0 0
        %1580 = vmatprep.subr.bf16.mxu0 0
        %1581 = vmatpush2.bf16.msra.mxu0 0
        %1582 = vmatprep.subr.bf16.mxu0 0
        %1583 = vmatpush2.bf16.msra.mxu0 0
        %1584 = vmatprep.subr.bf16.mxu0 0
        %1585 = vmatpush2.bf16.msra.mxu0 0
        %1586 = vmatprep.subr.bf16.mxu0 0
        %1587 = vmatpush2.bf16.msra.mxu0 0
        %1588 = vmatprep.subr.bf16.mxu0 0
        %1589 = vmatpush2.bf16.msra.mxu0 0
        %1590 = vmatprep.mubr.bf16.mxu0 0
        %1591 = vmatmul.mubr.bf16.gmra.mxu0 %v1553
        %v1592 = vpop.f32.mrf.mxu0
        %v1593 = vadd.f32 0.0, %v1592
        %v1594 = vpop.f32.mrf.mxu0
        %v1595 = vpop.f32.mrf.mxu0
        %v1596 = vpop.f32.mrf.mxu0
        %1597 = vdwg.mxu0
        %v1599 = vsel %vm1216, %v1454, 0
        %v1602 = vsel %vm1462, %v1458, 0
        %1604 = vmatprep.subr.bf16.mxu0 0
        %1605 = vmatpush1.bf16.msra.mxu0 0
        %1606 = vmatprep.subr.bf16.mxu0 0
        %1607 = vmatpush1.bf16.msra.mxu0 0
        %1608 = vmatprep.subr.bf16.mxu0 0
        %1609 = vmatpush1.bf16.msra.mxu0 0
        %1610 = vmatprep.subr.bf16.mxu0 0
        %1611 = vmatpush1.bf16.msra.mxu0 0
        %1612 = vmatprep.subr.bf16.mxu0 0
        %1613 = vmatpush1.bf16.msra.mxu0 0
        %1614 = vmatprep.subr.bf16.mxu0 0
        %1615 = vmatpush1.bf16.msra.mxu0 0
        %1616 = vmatprep.subr.bf16.mxu0 0
        %1617 = vmatpush1.bf16.msra.mxu0 0
        %1618 = vmatprep.subr.bf16.mxu0 0
        %1619 = vmatpush1.bf16.msra.mxu0 %v1602
        %1620 = vmatprep.subr.bf16.mxu0 0
        %1621 = vmatpush2.bf16.msra.mxu0 0
        %1622 = vmatprep.subr.bf16.mxu0 0
        %1623 = vmatpush2.bf16.msra.mxu0 0
        %1624 = vmatprep.subr.bf16.mxu0 0
        %1625 = vmatpush2.bf16.msra.mxu0 0
        %1626 = vmatprep.subr.bf16.mxu0 0
        %1627 = vmatpush2.bf16.msra.mxu0 0
        %1628 = vmatprep.subr.bf16.mxu0 0
        %1629 = vmatpush2.bf16.msra.mxu0 0
        %1630 = vmatprep.subr.bf16.mxu0 0
        %1631 = vmatpush2.bf16.msra.mxu0 0
        %1632 = vmatprep.subr.bf16.mxu0 0
        %1633 = vmatpush2.bf16.msra.mxu0 0
        %1634 = vmatprep.subr.bf16.mxu0 0
        %1635 = vmatpush2.bf16.msra.mxu0 0
        %1636 = vmatprep.mubr.bf16.mxu0 0
        %1637 = vmatmul.mubr.bf16.gmra.mxu0 %v1599
        %v1638 = vpop.f32.mrf.mxu0
        %v1639 = vadd.f32 0.0, %v1638
        %v1640 = vpop.f32.mrf.mxu0
        %v1641 = vpop.f32.mrf.mxu0
        %v1642 = vpop.f32.mrf.mxu0
        %1643 = vdwg.mxu0
        %v1644 = vcombine.low %v1501, %v1593
        %v1645 = vcombine.high %v1501, %v1593
        %v1647 = vunpack.c.l.s4 1983009808
        %v1648 = vunpack.c.0.s8 %v1647
        %v1649 = vlaneseq
        %v1650 = vshrl.u32 %v1649, 7
        %v1651 = vsub.s32 %v1648, %v1650
        %v1652 = vrot.slane %v1644, %v1651
        %v1654 = vunpack.c.l.s4 1983009808
        %v1655 = vunpack.c.0.s8 %v1654
        %v1656 = vlaneseq
        %v1657 = vshrl.u32 %v1656, 7
        %v1658 = vsub.s32 %v1655, %v1657
        %v1659 = vrot.slane %v1645, %v1658
        %v1660 = vcombine.low %v1547, %v1639
        %v1661 = vcombine.high %v1547, %v1639
        %v1663 = vunpack.c.l.s4 1983009808
        %v1664 = vunpack.c.0.s8 %v1663
        %v1665 = vlaneseq
        %v1666 = vshrl.u32 %v1665, 7
        %v1667 = vsub.s32 %v1664, %v1666
        %v1668 = vrot.slane %v1660, %v1667
        %v1670 = vunpack.c.l.s4 1983009808
        %v1671 = vunpack.c.0.s8 %v1670
        %v1672 = vlaneseq
        %v1673 = vshrl.u32 %v1672, 7
        %v1674 = vsub.s32 %v1671, %v1673
        %v1675 = vrot.slane %v1661, %v1674
        %v1676 = vcombine.low %v1652, %v1668
        %v1677 = vcombine.high %v1652, %v1668
        %v1679 = vunpack.c.l.s4 1934713408
        %v1680 = vunpack.c.0.s8 %v1679
        %v1681 = vlaneseq
        %v1682 = vshrl.u32 %v1681, 7
        %v1683 = vsub.s32 %v1680, %v1682
        %v1684 = vrot.slane %v1676, %v1683
        %v1686 = vunpack.c.l.s4 1934713408
        %v1687 = vunpack.c.0.s8 %v1686
        %v1688 = vlaneseq
        %v1689 = vshrl.u32 %v1688, 7
        %v1690 = vsub.s32 %v1687, %v1689
        %v1691 = vrot.slane %v1677, %v1690
        %v1692 = vcombine.low %v1659, %v1675
        %v1693 = vcombine.high %v1659, %v1675
        %v1695 = vunpack.c.l.s4 1934713408
        %v1696 = vunpack.c.0.s8 %v1695
        %v1697 = vlaneseq
        %v1698 = vshrl.u32 %v1697, 7
        %v1699 = vsub.s32 %v1696, %v1698
        %v1700 = vrot.slane %v1692, %v1699
        %v1702 = vunpack.c.l.s4 1934713408
        %v1703 = vunpack.c.0.s8 %v1702
        %v1704 = vlaneseq
        %v1705 = vshrl.u32 %v1704, 7
        %v1706 = vsub.s32 %v1703, %v1705
        %v1707 = vrot.slane %v1693, %v1706
        %v1708 = vcombine.high %v1684, 0.0
        %v1709 = vcombine.high %v1691, 0.0
        %v1710 = vcombine.high %v1700, 0.0
        %v1711 = vcombine.high %v1707, 0.0
        %v1712 = vcombine.low %v1684, %v1691
        %v1714 = vunpack.c.l.s4 1983009808
        %v1715 = vunpack.c.0.s8 %v1714
        %v1716 = vlaneseq
        %v1717 = vshrl.u32 %v1716, 7
        %v1718 = vsub.s32 %v1715, %v1717
        %v1719 = vrot.slane %v1712, %v1718
        %v1720 = vcombine.low %v1708, %v1709
        %v1722 = vunpack.c.l.s4 1983009808
        %v1723 = vunpack.c.0.s8 %v1722
        %v1724 = vlaneseq
        %v1725 = vshrl.u32 %v1724, 7
        %v1726 = vsub.s32 %v1723, %v1725
        %v1727 = vrot.slane %v1720, %v1726
        %v1728 = vcombine.low %v1700, %v1707
        %v1730 = vunpack.c.l.s4 1983009808
        %v1731 = vunpack.c.0.s8 %v1730
        %v1732 = vlaneseq
        %v1733 = vshrl.u32 %v1732, 7
        %v1734 = vsub.s32 %v1731, %v1733
        %v1735 = vrot.slane %v1728, %v1734
        %v1736 = vcombine.low %v1710, %v1711
        %v1738 = vunpack.c.l.s4 1983009808
        %v1739 = vunpack.c.0.s8 %v1738
        %v1740 = vlaneseq
        %v1741 = vshrl.u32 %v1740, 7
        %v1742 = vsub.s32 %v1739, %v1741
        %v1743 = vrot.slane %v1736, %v1742
        %v1744 = vcombine.low %v1719, %v1727
        %v1745 = vcombine.high %v1719, %v1727
        %v1747 = vunpack.c.l.s4 1934713408
        %v1748 = vunpack.c.0.s8 %v1747
        %v1749 = vlaneseq
        %v1750 = vshrl.u32 %v1749, 7
        %v1751 = vsub.s32 %v1748, %v1750
        %v1752 = vrot.slane %v1744, %v1751
        %v1754 = vunpack.c.l.s4 1934713408
        %v1755 = vunpack.c.0.s8 %v1754
        %v1756 = vlaneseq
        %v1757 = vshrl.u32 %v1756, 7
        %v1758 = vsub.s32 %v1755, %v1757
        %v1759 = vrot.slane %v1745, %v1758
        %v1760 = vcombine.low %v1735, %v1743
        %v1761 = vcombine.high %v1735, %v1743
        %v1763 = vunpack.c.l.s4 1934713408
        %v1764 = vunpack.c.0.s8 %v1763
        %v1765 = vlaneseq
        %v1766 = vshrl.u32 %v1765, 7
        %v1767 = vsub.s32 %v1764, %v1766
        %v1768 = vrot.slane %v1760, %v1767
        %v1770 = vunpack.c.l.s4 1934713408
        %v1771 = vunpack.c.0.s8 %v1770
        %v1772 = vlaneseq
        %v1773 = vshrl.u32 %v1772, 7
        %v1774 = vsub.s32 %v1771, %v1773
        %v1775 = vrot.slane %v1761, %v1774
        %v1776 = vcombine.low %v1752, %v1768
        %v1777 = vcombine.high %v1752, %v1768
        %v1778 = vcombine.low %v1759, %v1775
        %v1779 = vcombine.high %v1759, %v1775
        %1781 = vrot.lane.b32.xlu0 %v1777, 8
        %v1782 = vpop.permute.xlu0 %1781
        %1785 = vrot.lane.b32.xlu0 %v1778, 16
        %v1786 = vpop.permute.xlu0 %1785
        %1789 = vrot.lane.b32.xlu0 %v1779, 24
        %v1790 = vpop.permute.xlu0 %1789
        %v1792 = vsel %vm1216, %v1776, %v1782
        %vm1793 = vcmask 130048
        %v1794 = vsel %vm1793, %v1792, %v1786
        %vm1795 = vcmask 195584
        %v1796 = vsel %vm1795, %v1794, %v1790
        %v1797 = vpack.c.bf16 %v1796, %v1796
        %v1798 = vld [vmem:[%s627] sm:$0xf]
        %v1799 = vld [vmem:[%s627 + $0x4] sm:$0xf]
        %v1800 = vld [vmem:[%s627 + $0x8] sm:$0xf]
        %v1801 = vld [vmem:[%s627 + $0xc] sm:$0xf]
        %v1802 = vld [vmem:[%s630] sm:$0x1]
        %v1804 = vlaneseq
        %v1805 = vshrl.u32 %v1804, 7
        %v1806 = vsub.s32 0, %v1805
        %v1807 = vrot.slane %v1802, %v1806
        %v1813 = vunpack.c.l.b16 %v1798
        %v1814 = vunpack.c.l.b16 %v1799
        %v1815 = vunpack.c.l.b16 %v1800
        %v1816 = vunpack.c.l.b16 %v1801
        %v1817 = vpack.c.b16 %v1814, %v1813
        %v1818 = vpack.c.b16 %v1816, %v1815
        %v1822 = vsel %vm664, %v1797, 0
        %1824 = vmatprep.subr.bf16.mxu0 0
        %1825 = vmatpush1.bf16.msra.mxu0 0
        %1826 = vmatprep.subr.bf16.mxu0 0
        %1827 = vmatpush1.bf16.msra.mxu0 0
        %1828 = vmatprep.subr.bf16.mxu0 0
        %1829 = vmatpush1.bf16.msra.mxu0 0
        %1830 = vmatprep.subr.bf16.mxu0 0
        %1831 = vmatpush1.bf16.msra.mxu0 0
        %1832 = vmatprep.subr.bf16.mxu0 0
        %1833 = vmatpush1.bf16.msra.mxu0 0
        %1834 = vmatprep.subr.bf16.mxu0 0
        %1835 = vmatpush1.bf16.msra.mxu0 0
        %1836 = vmatprep.subr.bf16.mxu0 0
        %1837 = vmatpush1.bf16.msra.mxu0 %v1818
        %1838 = vmatprep.subr.bf16.mxu0 0
        %1839 = vmatpush1.bf16.msra.mxu0 %v1817
        %1840 = vmatprep.subr.bf16.mxu0 0
        %1841 = vmatpush2.bf16.msra.mxu0 0
        %1842 = vmatprep.subr.bf16.mxu0 0
        %1843 = vmatpush2.bf16.msra.mxu0 0
        %1844 = vmatprep.subr.bf16.mxu0 0
        %1845 = vmatpush2.bf16.msra.mxu0 0
        %1846 = vmatprep.subr.bf16.mxu0 0
        %1847 = vmatpush2.bf16.msra.mxu0 0
        %1848 = vmatprep.subr.bf16.mxu0 0
        %1849 = vmatpush2.bf16.msra.mxu0 0
        %1850 = vmatprep.subr.bf16.mxu0 0
        %1851 = vmatpush2.bf16.msra.mxu0 0
        %1852 = vmatprep.subr.bf16.mxu0 0
        %1853 = vmatpush2.bf16.msra.mxu0 0
        %1854 = vmatprep.subr.bf16.mxu0 0
        %1855 = vmatpush2.bf16.msra.mxu0 0
        %1856 = vmatprep.mubr.bf16.mxu0 0
        %1857 = vmatmul.mubr.bf16.gmra.mxu0 %v1822
        %v1858 = vpop.f32.mrf.mxu0
        %v1859 = vadd.f32 %v1807, %v1858
        %v1860 = vpop.f32.mrf.mxu0
        %v1861 = vpop.f32.mrf.mxu0
        %v1862 = vpop.f32.mrf.mxu0
        %1863 = vdwg.mxu0
        %v1864 = vadd.f32 %v661, %v1859
        %v1865 = vld [vmem:[%s633] sm:$0x1]
        %v1866 = vld [vmem:[%s636] sm:$0x1]
        %v1867 = vsel %vm664, %v1864, 0.0
        %1868 = vadd.xlane.f32.xlu0 %v1867
        %v1869 = vpop.xlane.xlu0 %1868
        %v1870 = vmul.f32 %v1869, %v668
        %v1871 = vsub.f32 %v1864, %v1870
        %v1872 = vmul.f32 %v1871, %v1871
        %v1873 = vsel %vm664, %v1872, 0.0
        %1874 = vadd.xlane.f32.xlu0 %v1873
        %v1875 = vpop.xlane.xlu0 %1874
        %v1876 = vmul.f32 %v1875, %v668
        %v1877 = vadd.f32 %v1876, 1e-05
        %v1878 = vrsqrt.pop %v1877
        %v1879 = vmul.f32 %v1871, %v1878
        %v1881 = vlaneseq
        %v1882 = vshrl.u32 %v1881, 7
        %v1883 = vsub.s32 0, %v1882
        %v1884 = vrot.slane %v1865, %v1883
        %v1886 = vmul.f32 %v1879, %v1884
        %v1888 = vlaneseq
        %v1889 = vshrl.u32 %v1888, 7
        %v1890 = vsub.s32 0, %v1889
        %v1891 = vrot.slane %v1866, %v1890
        %v1893 = vadd.f32 %v1886, %v1891
        %v1894 = vpack.c.bf16 %v1893, %v1893
        %v1895 = vld [vmem:[%s641] sm:$0xf]
        %v1896 = vld [vmem:[%s641 + $0x4] sm:$0xf]
        %v1897 = vld [vmem:[%s641 + $0x8] sm:$0xf]
        %v1898 = vld [vmem:[%s641 + $0xc] sm:$0xf]
        %v1899 = vld [vmem:[%s644] sm:$0x1]
        %v1901 = vlaneseq
        %v1902 = vshrl.u32 %v1901, 7
        %v1903 = vsub.s32 0, %v1902
        %v1904 = vrot.slane %v1899, %v1903
        %v1910 = vunpack.c.l.b16 %v1895
        %v1911 = vunpack.c.l.b16 %v1896
        %v1912 = vunpack.c.l.b16 %v1897
        %v1913 = vunpack.c.l.b16 %v1898
        %v1914 = vpack.c.b16 %v1911, %v1910
        %v1915 = vpack.c.b16 %v1913, %v1912
        %v1919 = vsel %vm664, %v1894, 0
        %1921 = vmatprep.subr.bf16.mxu0 0
        %1922 = vmatpush1.bf16.msra.mxu0 0
        %1923 = vmatprep.subr.bf16.mxu0 0
        %1924 = vmatpush1.bf16.msra.mxu0 0
        %1925 = vmatprep.subr.bf16.mxu0 0
        %1926 = vmatpush1.bf16.msra.mxu0 0
        %1927 = vmatprep.subr.bf16.mxu0 0
        %1928 = vmatpush1.bf16.msra.mxu0 0
        %1929 = vmatprep.subr.bf16.mxu0 0
        %1930 = vmatpush1.bf16.msra.mxu0 0
        %1931 = vmatprep.subr.bf16.mxu0 0
        %1932 = vmatpush1.bf16.msra.mxu0 0
        %1933 = vmatprep.subr.bf16.mxu0 0
        %1934 = vmatpush1.bf16.msra.mxu0 %v1915
        %1935 = vmatprep.subr.bf16.mxu0 0
        %1936 = vmatpush1.bf16.msra.mxu0 %v1914
        %1937 = vmatprep.subr.bf16.mxu0 0
        %1938 = vmatpush2.bf16.msra.mxu0 0
        %1939 = vmatprep.subr.bf16.mxu0 0
        %1940 = vmatpush2.bf16.msra.mxu0 0
        %1941 = vmatprep.subr.bf16.mxu0 0
        %1942 = vmatpush2.bf16.msra.mxu0 0
        %1943 = vmatprep.subr.bf16.mxu0 0
        %1944 = vmatpush2.bf16.msra.mxu0 0
        %1945 = vmatprep.subr.bf16.mxu0 0
        %1946 = vmatpush2.bf16.msra.mxu0 0
        %1947 = vmatprep.subr.bf16.mxu0 0
        %1948 = vmatpush2.bf16.msra.mxu0 0
        %1949 = vmatprep.subr.bf16.mxu0 0
        %1950 = vmatpush2.bf16.msra.mxu0 0
        %1951 = vmatprep.subr.bf16.mxu0 0
        %1952 = vmatpush2.bf16.msra.mxu0 0
        %1953 = vmatprep.mubr.bf16.mxu0 0
        %1954 = vmatmul.mubr.bf16.gmra.mxu0 %v1919
        %v1955 = vpop.f32.mrf.mxu0
        %v1956 = vadd.f32 %v1904, %v1955
        %v1957 = vpop.f32.mrf.mxu0
        %v1958 = vpop.f32.mrf.mxu0
        %v1959 = vpop.f32.mrf.mxu0
        %1960 = vdwg.mxu0
        %v1961 = vmax.f32 %v1956, 0.0
        %v1962 = vpack.c.bf16 %v1961, %v1961
        %v1963 = vld [vmem:[%s649] sm:$0xf]
        %v1964 = vld [vmem:[%s649 + $0x4] sm:$0xf]
        %v1965 = vld [vmem:[%s649 + $0x8] sm:$0xf]
        %v1966 = vld [vmem:[%s649 + $0xc] sm:$0xf]
        %v1967 = vld [vmem:[%s649 + $0x10] sm:$0xf]
        %v1968 = vld [vmem:[%s649 + $0x14] sm:$0xf]
        %v1969 = vld [vmem:[%s649 + $0x18] sm:$0xf]
        %v1970 = vld [vmem:[%s649 + $0x1c] sm:$0xf]
        %v1971 = vld [vmem:[%s649 + $0x20] sm:$0xf]
        %v1972 = vld [vmem:[%s649 + $0x24] sm:$0xf]
        %v1973 = vld [vmem:[%s649 + $0x28] sm:$0xf]
        %v1974 = vld [vmem:[%s649 + $0x2c] sm:$0xf]
        %v1975 = vld [vmem:[%s649 + $0x30] sm:$0xf]
        %v1976 = vld [vmem:[%s649 + $0x34] sm:$0xf]
        %v1977 = vld [vmem:[%s649 + $0x38] sm:$0xf]
        %v1978 = vld [vmem:[%s649 + $0x3c] sm:$0xf]
        %v1979 = vld [vmem:[%s652] sm:$0x1]
        %v1981 = vlaneseq
        %v1982 = vshrl.u32 %v1981, 7
        %v1983 = vsub.s32 0, %v1982
        %v1984 = vrot.slane %v1979, %v1983
        %v2002 = vunpack.c.l.b16 %v1963
        %v2003 = vunpack.c.l.b16 %v1964
        %v2004 = vunpack.c.l.b16 %v1965
        %v2005 = vunpack.c.l.b16 %v1966
        %v2006 = vunpack.c.l.b16 %v1967
        %v2007 = vunpack.c.l.b16 %v1968
        %v2008 = vunpack.c.l.b16 %v1969
        %v2009 = vunpack.c.l.b16 %v1970
        %v2010 = vunpack.c.l.b16 %v1971
        %v2011 = vunpack.c.l.b16 %v1972
        %v2012 = vunpack.c.l.b16 %v1973
        %v2013 = vunpack.c.l.b16 %v1974
        %v2014 = vunpack.c.l.b16 %v1975
        %v2015 = vunpack.c.l.b16 %v1976
        %v2016 = vunpack.c.l.b16 %v1977
        %v2017 = vunpack.c.l.b16 %v1978
        %v2018 = vpack.c.b16 %v2003, %v2002
        %v2019 = vpack.c.b16 %v2005, %v2004
        %v2020 = vpack.c.b16 %v2007, %v2006
        %v2021 = vpack.c.b16 %v2009, %v2008
        %v2022 = vpack.c.b16 %v2011, %v2010
        %v2023 = vpack.c.b16 %v2013, %v2012
        %v2024 = vpack.c.b16 %v2015, %v2014
        %v2025 = vpack.c.b16 %v2017, %v2016
        %2034 = vmatprep.subr.bf16.mxu0 0
        %2035 = vmatpush1.bf16.msra.mxu0 %v2025
        %2036 = vmatprep.subr.bf16.mxu0 0
        %2037 = vmatpush1.bf16.msra.mxu0 %v2024
        %2038 = vmatprep.subr.bf16.mxu0 0
        %2039 = vmatpush1.bf16.msra.mxu0 %v2023
        %2040 = vmatprep.subr.bf16.mxu0 0
        %2041 = vmatpush1.bf16.msra.mxu0 %v2022
        %2042 = vmatprep.subr.bf16.mxu0 0
        %2043 = vmatpush1.bf16.msra.mxu0 %v2021
        %2044 = vmatprep.subr.bf16.mxu0 0
        %2045 = vmatpush1.bf16.msra.mxu0 %v2020
        %2046 = vmatprep.subr.bf16.mxu0 0
        %2047 = vmatpush1.bf16.msra.mxu0 %v2019
        %2048 = vmatprep.subr.bf16.mxu0 0
        %2049 = vmatpush1.bf16.msra.mxu0 %v2018
        %2050 = vmatprep.subr.bf16.mxu0 0
        %2051 = vmatpush2.bf16.msra.mxu0 0
        %2052 = vmatprep.subr.bf16.mxu0 0
        %2053 = vmatpush2.bf16.msra.mxu0 0
        %2054 = vmatprep.subr.bf16.mxu0 0
        %2055 = vmatpush2.bf16.msra.mxu0 0
        %2056 = vmatprep.subr.bf16.mxu0 0
        %2057 = vmatpush2.bf16.msra.mxu0 0
        %2058 = vmatprep.subr.bf16.mxu0 0
        %2059 = vmatpush2.bf16.msra.mxu0 0
        %2060 = vmatprep.subr.bf16.mxu0 0
        %2061 = vmatpush2.bf16.msra.mxu0 0
        %2062 = vmatprep.subr.bf16.mxu0 0
        %2063 = vmatpush2.bf16.msra.mxu0 0
        %2064 = vmatprep.subr.bf16.mxu0 0
        %2065 = vmatpush2.bf16.msra.mxu0 0
        %2066 = vmatprep.mubr.bf16.mxu0 0
        %2067 = vmatmul.mubr.bf16.gmra.mxu0 %v1962
        %v2068 = vpop.f32.mrf.mxu0
        %v2069 = vadd.f32 %v1984, %v2068
        %v2070 = vpop.f32.mrf.mxu0
        %v2071 = vpop.f32.mrf.mxu0
        %v2072 = vpop.f32.mrf.mxu0
        %2073 = vdwg.mxu0
        %v2074 = vadd.f32 %v1864, %v2069
        %2075 = vst.msk [vmem:[#allocation2] sm:$0xff] %vm664, %v2074
        %p2076 = scmp.eq.s32.totalorder %s33, 1
        // Predicated region
        $region81: #{tpu_custom_call.1} parent=75 // pred_check
          %p2077 = pneg %p2076
        $region82: #{tpu_custom_call.1} parent=75 // pred_check_branch
          %2079 = sbr.rel (%p2077) target = $region84
        $region83: #{tpu_custom_call.1} parent=75 // pred_region
          %v2080 = vld [vmem:[#allocation2] sm:$0xff]
          %v2081 = vld [vmem:[%s12] sm:$0x1]
          %v2082 = vld [vmem:[%s13] sm:$0x1]
          %v2083 = vsel %vm664, %v2080, 0.0
          %2084 = vadd.xlane.f32.xlu0 %v2083
          %v2085 = vpop.xlane.xlu0 %2084
          %v2086 = vmul.f32 %v2085, %v668
          %v2087 = vsub.f32 %v2080, %v2086
          %v2088 = vmul.f32 %v2087, %v2087
          %v2089 = vsel %vm664, %v2088, 0.0
          %2090 = vadd.xlane.f32.xlu0 %v2089
          %v2091 = vpop.xlane.xlu0 %2090
          %v2092 = vmul.f32 %v2091, %v668
          %v2093 = vadd.f32 %v2092, 1e-05
          %v2094 = vrsqrt.pop %v2093
          %v2095 = vmul.f32 %v2087, %v2094
          %v2097 = vlaneseq
          %v2098 = vshrl.u32 %v2097, 7
          %v2099 = vsub.s32 0, %v2098
          %v2100 = vrot.slane %v2081, %v2099
          %v2102 = vmul.f32 %v2095, %v2100
          %v2104 = vlaneseq
          %v2105 = vshrl.u32 %v2104, 7
          %v2106 = vsub.s32 0, %v2105
          %v2107 = vrot.slane %v2082, %v2106
          %v2109 = vadd.f32 %v2102, %v2107
          %2110 = vst.msk [vmem:[%s607] sm:$0xff] %vm664, %v2109
        $region84: #{tpu_custom_call.1} parent=75 // pred_fallthru
          _
        %s2111 = sand.u32 %s402, 1
        %s2112 = scalar_lea.sflag [#allocation4], %s2111
        %s2113 = sand.u32 %s402, 1
        %s2114 = smul.addr %s2113, 8
        %s2115 = scalar_lea.vmem [#allocation3], %s2114
        // Predicated region
        $region85: #{tpu_custom_call.1} parent=75 // pred_check
          %p2116 = pneg %p412
        $region86: #{tpu_custom_call.1} parent=75 // pred_check_branch
          %2118 = sbr.rel (%p2116) target = $region88
        $region87: #{tpu_custom_call.1} parent=75 // pred_region
          %s2120 = ssub.s32 128, 128
          %2121 = vsyncadd %s2112, %s2120
          %s2122 = smul.addr %s32, 128
          %s2123 = scalar_lea.hbm %s14, %s2122
          %s2125 = sshll.u32 %s2115, 4
          %s2126 = int_to_ptr.vmem [resolvable:$true] %s2125
          %2128 = dma.vmem_to_hbm [thread:$0]  %s2126, 128, %s2123, %s2112
        $region88: #{tpu_custom_call.1} parent=75 // pred_fallthru
          _
      $region76: #{tpu_custom_call.1} parent=5 // pred_fallthru
        _
      %p2129 = scmp.le.s32.totalorder 2, %s23
      // Predicated region
      $region89: #{tpu_custom_call.1} parent=5 // pred_check
        %p2130 = pneg %p2129
      $region90: #{tpu_custom_call.1} parent=5 // pred_check_branch
        %2132 = sbr.rel (%p2130) target = $region92
      $region91: #{tpu_custom_call.1} parent=5 // pred_region
        %s2133 = ssub.s32 %s23, 2
        // Predicated region
        $region93: #{tpu_custom_call.1} parent=91 // pred_check
          %p2134 = pneg %p418
        $region94: #{tpu_custom_call.1} parent=91 // pred_check_branch
          %2136 = sbr.rel (%p2134) target = $region96
        $region95: #{tpu_custom_call.1} parent=91 // pred_region
          %s2137 = sand.u32 %s403, 1
          %s2138 = scalar_lea.sflag [#allocation4], %s2137
          %s2139 = sand.u32 %s403, 1
          %s2140 = smul.addr %s2139, 8
          %s2141 = scalar_lea.vmem [#allocation3], %s2140
          %2142 = dma.done %s2138, 128
        $region96: #{tpu_custom_call.1} parent=91 // pred_fallthru
          _
      $region92: #{tpu_custom_call.1} parent=5 // pred_fallthru
        _
    $region6: #{tpu_custom_call.1} parent=1 // loop_footer
      %s27 = sadd.s32 1, %s23
    $region7: #{tpu_custom_call.1} parent=1 // loop_footer_branch
      %22 = sbr.rel target = $region3
    $region8: #{tpu_custom_call.1} parent=1 // loop_exit
      _
    %2143 = vsyncpa [#allocation4], 1
    %s2144 = scalar_lea.sflag [#allocation4], 1
    %2145 = vsyncpa %s2144, 1

</llo_original>
